<compile_context>
chip_gen: v7x
topology: tpu7x:2x2x1
jax: 0.10.0
libtpu: 0.0.40
codegen_flags: <defaults>
</compile_context>

<pallas_src>
import math
import functools

import jax
import jax.numpy as jnp
from jax.experimental import pallas as pl
from jax.experimental.pallas import tpu as pltpu


def _cbam_kernel(wsp_ref, w1t_ref, w2t_ref, hh_ref, ww_ref, x_ref, o_ref, x1_ref,
                 *, k, height, width):
    """One batch tile of CBAM.

    wsp_ref : SMEM f32[2*k*k]     spatial Conv2d(2,1,k) weights, flattened (ci,kh,kw)
    w1t_ref : VMEM f32[C, Ch]     fc1 weight transposed  (Conv2d(C, C//r, 1) squeezed)
    w2t_ref : VMEM f32[Ch, C]     fc2 weight transposed  (Conv2d(C//r, C, 1) squeezed)
    hh_ref  : VMEM i32[1, HW]     row index of each flattened spatial position
    ww_ref  : VMEM i32[1, HW]     col index of each flattened spatial position
    x_ref   : VMEM [bt, C, HW]    input tile
    o_ref   : VMEM [bt, C, HW]    output tile
    x1_ref  : VMEM f32[bt, C, HW] scratch: staged channel-gated tile x*ca
    """
    f32 = jnp.float32
    pad = (k - 1) // 2
    bt, c, hw = x_ref.shape

    # ---------------- Channel attention: pooled stats + shared MLP (MXU) ----------------
    xv = x_ref[...].astype(f32)                          # (bt, C, HW)
    avg_p = jnp.sum(xv, axis=-1) * (1.0 / hw)            # (bt, C)  AdaptiveAvgPool2d(1)
    max_p = jnp.max(xv, axis=-1)                         # (bt, C)  AdaptiveMaxPool2d(1)

    w1t = w1t_ref[...]                                   # (C, Ch)
    w2t = w2t_ref[...]                                   # (Ch, C)

    def shared_mlp(p):                                   # (bt, C) -> (bt, C)
        h = jnp.dot(p, w1t, preferred_element_type=f32)  # (bt, Ch)
        h = jnp.maximum(h, 0.0)                          # ReLU
        return jnp.dot(h, w2t, preferred_element_type=f32)

    ca = jax.nn.sigmoid(shared_mlp(avg_p) + shared_mlp(max_p))    # (bt, C)
    ca_b = ca[:, :, None]                                          # (bt, C, 1), hoisted

    # ---------------- Stage x1 = x * ca exactly once (f32 VMEM scratch) ----------------
    x1_ref[...] = x_ref[...].astype(f32) * ca_b          # single full-tile vmul

    # ---------------- Spatial attention (reads the staged copy) ----------------
    x1v = x1_ref[...]                                    # (bt, C, HW)
    avg_sp = jnp.sum(x1v, axis=1) * (1.0 / c)            # (bt, HW) mean over channels
    max_sp = jnp.max(x1v, axis=1)                        # (bt, HW) max over channels
    s = jnp.stack([avg_sp, max_sp], axis=0)              # (2, bt, HW): one roll per tap

    hh = hh_ref[...]                                     # (1, HW)
    ww = ww_ref[...]                                     # (1, HW)
    # Per-offset zero-padding validity rows built with cheap VPU compares.
    mh = [((hh >= -dy) & (hh < height - dy)).astype(f32) for dy in range(-pad, pad + 1)]
    mw = [((ww >= -dx) & (ww < width - dx)).astype(f32) for dx in range(-pad, pad + 1)]

    acc = jnp.zeros_like(avg_sp)                         # (bt, HW)
    tap = 0
    for iy, dy in enumerate(range(-pad, pad + 1)):
        for ix, dx in enumerate(range(-pad, pad + 1)):
            shift = dy * width + dx
            rolled = s if shift == 0 else jnp.roll(s, -shift, axis=-1)  # single XLU roll
            m = mh[iy] * mw[ix]                          # (1, HW) validity for this tap
            wm_a = m * wsp_ref[tap]                      # fold scalar tap weight (avg ch)
            wm_b = m * wsp_ref[k * k + tap]              # fold scalar tap weight (max ch)
            acc = acc + wm_a * rolled[0] + wm_b * rolled[1]
            tap += 1

    sa = jax.nn.sigmoid(acc)                             # (bt, HW)

    # ---------------- Final apply reads the staged x1, stream out ----------------
    o_ref[...] = (x1_ref[...] * sa[:, None, :]).astype(o_ref.dtype)


def _vmem_budgets():
    """Per-generation (block_bytes_budget, vmem_limit_cap) in bytes."""
    cap = 64 * 1024 * 1024                               # conservative (v7x-sized)
    try:
        get_info = getattr(pltpu, "get_tpu_info", None)
        if get_info is not None:
            info = get_info()
            cap = int(getattr(info, "vmem_capacity_bytes", cap))
    except Exception:
        pass
    if cap >= 96 * 1024 * 1024:                          # v5e / v6e: 128 MiB physical
        return 16 * 1024 * 1024, 100 * 1024 * 1024
    return 8 * 1024 * 1024, 52 * 1024 * 1024             # v7x: 64 MiB physical


def cbam_block_forward(x, fc1_w, fc2_w, sp_w):
    """CBAM forward.

    x     : (B, C, H, W)
    fc1_w : (C//ratio, C)      -- Conv2d(C, C//ratio, 1, bias=False) weight squeezed
    fc2_w : (C, C//ratio)      -- Conv2d(C//ratio, C, 1, bias=False) weight squeezed
    sp_w  : (2, k, k)          -- Conv2d(2, 1, k, bias=False) weight squeezed
    """
    B, C, H, W = x.shape
    Ch = fc1_w.shape[0]
    k = sp_w.shape[-1]
    HW = H * W

    x2 = x.reshape(B, C, HW)                             # lane-dense spatial axis
    wsp_flat = sp_w.reshape(-1).astype(jnp.float32)      # (2*k*k,) for SMEM
    w1t = jnp.asarray(fc1_w, jnp.float32).T              # (C, Ch)
    w2t = jnp.asarray(fc2_w, jnp.float32).T              # (Ch, C)

    pos = jnp.arange(HW, dtype=jnp.int32)
    hh = (pos // W).reshape(1, HW)                       # row index per flat position
    ww = (pos % W).reshape(1, HW)                        # col index per flat position

    block_budget, vmem_cap = _vmem_budgets()

    itemsize = jnp.dtype(x.dtype).itemsize
    per_batch_io = C * HW * itemsize
    per_batch_f32 = C * HW * 4

    # ---- Batch tiling: biggest block under the per-generation budget, while
    # ---- targeting >= 4 grid steps (>= 2 per TensorCore on v7x) when B allows.
    bt = max(1, min(B, block_budget // max(per_batch_io, 1)))
    if B >= 4:
        bt = max(1, min(bt, B // 4))
    elif B >= 2:
        bt = max(1, min(bt, B // 2))
    while B % bt:
        bt -= 1
    num_blocks = B // bt

    # VMEM accounting: double-buffered in + out blocks (4x), f32 staging scratch (1x),
    # double-buffered residents, plus headroom for Mosaic internals.
    block_io = bt * per_batch_io
    block_stage = bt * per_batch_f32
    aux = (w1t.size + w2t.size) * 4 + (hh.size + ww.size) * 4
    need = 4 * block_io + block_stage + 2 * aux + (2 << 20)
    vmem_limit = int(min(vmem_cap, max(32 * 1024 * 1024, need)))
    # TODO(synk): if a single-batch plane exceeds the block budget, a two-pass
    # spatially-tiled variant (with conv halo) is needed; not implemented here.

    out = pl.pallas_call(
        functools.partial(_cbam_kernel, k=k, height=H, width=W),
        out_shape=jax.ShapeDtypeStruct((B, C, HW), x.dtype),
        grid=(num_blocks,),
        in_specs=[
            pl.BlockSpec(memory_space=pltpu.MemorySpace.SMEM),   # spatial conv weights
            pl.BlockSpec((C, Ch), lambda b: (0, 0)),             # fc1^T (resident)
            pl.BlockSpec((Ch, C), lambda b: (0, 0)),             # fc2^T (resident)
            pl.BlockSpec((1, HW), lambda b: (0, 0)),             # row-index row
            pl.BlockSpec((1, HW), lambda b: (0, 0)),             # col-index row
            pl.BlockSpec((bt, C, HW), lambda b: (b, 0, 0)),      # x batch tile
        ],
        out_specs=pl.BlockSpec((bt, C, HW), lambda b: (b, 0, 0)),
        scratch_shapes=[pltpu.VMEM((bt, C, HW), jnp.float32)],   # staged x*ca
        compiler_params=pltpu.CompilerParams(
            dimension_semantics=("parallel",),
            vmem_limit_bytes=vmem_limit,
        ),
    )(wsp_flat, w1t, w2t, hh, ww, x2)
    return out.reshape(B, C, H, W)


def _reference(x, fc1_w, fc2_w, sp_w):
    """Pure-JAX reference mirroring the PyTorch cbam_block semantics."""
    B, C, H, W = x.shape
    k = sp_w.shape[-1]
    pad = (k - 1) // 2

    # Channel attention.
    avg_p = jnp.mean(x, axis=(2, 3))                     # (B, C)
    max_p = jnp.max(x, axis=(2, 3))                      # (B, C)

    def mlp(p):
        h = jnp.maximum(p @ fc1_w.T, 0.0)
        return h @ fc2_w.T

    ca = jax.nn.sigmoid(mlp(avg_p) + mlp(max_p))         # (B, C)
    x1 = x * ca[:, :, None, None]

    # Spatial attention.
    avg_sp = jnp.mean(x1, axis=1, keepdims=True)         # (B,1,H,W)
    max_sp = jnp.max(x1, axis=1, keepdims=True)          # (B,1,H,W)
    s_in = jnp.concatenate([avg_sp, max_sp], axis=1)     # (B,2,H,W)
    conv = jax.lax.conv_general_dilated(
        s_in, sp_w.reshape(1, 2, k, k),
        window_strides=(1, 1),
        padding=[(pad, pad), (pad, pad)],
        dimension_numbers=("NCHW", "OIHW", "NCHW"))
    sa = jax.nn.sigmoid(conv)                            # (B,1,H,W)
    return x1 * sa


if __name__ == "__main__":
    # Small shapes consistent with the module: NCHW input; C must be >= ratio.
    B, C, H, W = 2, 32, 16, 16
    ratio, kernel_size = 16, 3
    Ch = C // ratio                                      # hidden width of the shared MLP

    key = jax.random.PRNGKey(0)
    kx, k1, k2, k3 = jax.random.split(key, 4)
    x = jax.random.normal(kx, (B, C, H, W), dtype=jnp.float32)
    fc1_w = jax.random.normal(k1, (Ch, C), dtype=jnp.float32) * (1.0 / math.sqrt(C))
    fc2_w = jax.random.normal(k2, (C, Ch), dtype=jnp.float32) * (1.0 / math.sqrt(Ch))
    sp_w = (jax.random.normal(k3, (2, kernel_size, kernel_size), dtype=jnp.float32)
            * (1.0 / math.sqrt(2 * kernel_size * kernel_size)))

    out = jax.block_until_ready(cbam_block_forward(x, fc1_w, fc2_w, sp_w))
    ref = jax.block_until_ready(_reference(x, fc1_w, fc2_w, sp_w))

    assert out.shape == x.shape and out.dtype == x.dtype
    assert jnp.allclose(out, ref, atol=1e-4, rtol=1e-4), "mismatch vs reference"

    print("KERNEL_OK")
</pallas_src>

<mosaic_0001>
module attributes {stable_mosaic.version = 11 : i64} {
  func.func @_cbam_kernel(%arg0: i32, %arg1: memref<18xf32, #tpu.memory_space<smem>>, %arg2: memref<32x2xf32, #tpu.memory_space<vmem>>, %arg3: memref<2x32xf32, #tpu.memory_space<vmem>>, %arg4: memref<1x256xi32, #tpu.memory_space<vmem>>, %arg5: memref<1x256xi32, #tpu.memory_space<vmem>>, %arg6: memref<1x32x256xf32, #tpu.memory_space<vmem>>, %arg7: memref<1x32x256xf32, #tpu.memory_space<vmem>>, %arg8: memref<1x32x256xf32, #tpu.memory_space<vmem>>) attributes {dimension_semantics = [#tpu.dimension_semantics<parallel>], iteration_bounds = array<i64: 2>, scalar_prefetch = 0 : i64, scratch_operands = 1 : i64, tpu.core_type = #tpu.core_type<tc>, window_params = [{transform_indices = @transform_0, window_bounds = array<i64: 18>}, {pipeline_mode = #tpu.pipeline_mode<synchronous>, transform_indices = @transform_1, window_bounds = array<i64: 32, 2>}, {pipeline_mode = #tpu.pipeline_mode<synchronous>, transform_indices = @transform_2, window_bounds = array<i64: 2, 32>}, {pipeline_mode = #tpu.pipeline_mode<synchronous>, transform_indices = @transform_3, window_bounds = array<i64: 1, 256>}, {pipeline_mode = #tpu.pipeline_mode<synchronous>, transform_indices = @transform_4, window_bounds = array<i64: 1, 256>}, {transform_indices = @transform_5, window_bounds = array<i64: 1, 32, 256>}, {transform_indices = @transform_6, window_bounds = array<i64: 1, 32, 256>}]} {
    %c0 = arith.constant 0 : index
    %c0_0 = arith.constant 0 : index
    %c0_1 = arith.constant 0 : index
    %0 = vector.load %arg6[%c0, %c0_0, %c0_1] : memref<1x32x256xf32, #tpu.memory_space<vmem>>, vector<1x32x256xf32>
    %cst = arith.constant dense<0.000000e+00> : vector<1x32xf32>
    %1 = vector.multi_reduction <add>, %0, %cst [2] : vector<1x32x256xf32> to vector<1x32xf32>
    %cst_2 = arith.constant 3.906250e-03 : f32
    %2 = vector.broadcast %cst_2 : f32 to vector<1x32xf32>
    %3 = arith.mulf %1, %2 : vector<1x32xf32>
    %cst_3 = arith.constant dense<0xFF800000> : vector<1x32xf32>
    %4 = vector.multi_reduction <maximumf>, %0, %cst_3 [2] : vector<1x32x256xf32> to vector<1x32xf32>
    %c0_4 = arith.constant 0 : index
    %c0_5 = arith.constant 0 : index
    %5 = vector.load %arg2[%c0_4, %c0_5] : memref<32x2xf32, #tpu.memory_space<vmem>>, vector<32x2xf32>
    %c0_6 = arith.constant 0 : index
    %c0_7 = arith.constant 0 : index
    %6 = vector.load %arg3[%c0_6, %c0_7] : memref<2x32xf32, #tpu.memory_space<vmem>>, vector<2x32xf32>
    %cst_8 = arith.constant dense<0.000000e+00> : vector<1x2xf32>
    %7 = tpu.matmul %3, %5, %cst_8 {dimension_numbers = #tpu.dot_dimension_numbers<[1], [0], [0], [1], [0, 0, 1, 1], [], []>} : vector<1x32xf32>, vector<32x2xf32>, vector<1x2xf32> -> vector<1x2xf32>
    %cst_9 = arith.constant 0.000000e+00 : f32
    %8 = vector.broadcast %cst_9 : f32 to vector<1x2xf32>
    %9 = arith.maximumf %7, %8 : vector<1x2xf32>
    %cst_10 = arith.constant dense<0.000000e+00> : vector<1x32xf32>
    %10 = tpu.matmul %9, %6, %cst_10 {dimension_numbers = #tpu.dot_dimension_numbers<[1], [0], [0], [1], [0, 0, 1, 1], [], []>} : vector<1x2xf32>, vector<2x32xf32>, vector<1x32xf32> -> vector<1x32xf32>
    %cst_11 = arith.constant dense<0.000000e+00> : vector<1x2xf32>
    %11 = tpu.matmul %4, %5, %cst_11 {dimension_numbers = #tpu.dot_dimension_numbers<[1], [0], [0], [1], [0, 0, 1, 1], [], []>} : vector<1x32xf32>, vector<32x2xf32>, vector<1x2xf32> -> vector<1x2xf32>
    %cst_12 = arith.constant 0.000000e+00 : f32
    %12 = vector.broadcast %cst_12 : f32 to vector<1x2xf32>
    %13 = arith.maximumf %11, %12 : vector<1x2xf32>
    %cst_13 = arith.constant dense<0.000000e+00> : vector<1x32xf32>
    %14 = tpu.matmul %13, %6, %cst_13 {dimension_numbers = #tpu.dot_dimension_numbers<[1], [0], [0], [1], [0, 0, 1, 1], [], []>} : vector<1x2xf32>, vector<2x32xf32>, vector<1x32xf32> -> vector<1x32xf32>
    %15 = arith.addf %10, %14 : vector<1x32xf32>
    %16 = arith.negf %15 : vector<1x32xf32>
    %17 = math.exp %16 : vector<1x32xf32>
    %cst_14 = arith.constant 1.000000e+00 : f32
    %18 = vector.broadcast %cst_14 : f32 to vector<1x32xf32>
    %19 = arith.addf %18, %17 : vector<1x32xf32>
    %20 = arith.divf %18, %19 : vector<1x32xf32>
    %21 = vector.shape_cast %20 : vector<1x32xf32> to vector<1x32x1xf32>
    %c0_15 = arith.constant 0 : index
    %c0_16 = arith.constant 0 : index
    %c0_17 = arith.constant 0 : index
    %22 = vector.load %arg6[%c0_15, %c0_16, %c0_17] : memref<1x32x256xf32, #tpu.memory_space<vmem>>, vector<1x32x256xf32>
    %23 = vector.broadcast %21 : vector<1x32x1xf32> to vector<1x32x256xf32>
    %24 = arith.mulf %22, %23 : vector<1x32x256xf32>
    %c0_18 = arith.constant 0 : index
    %c0_19 = arith.constant 0 : index
    %c0_20 = arith.constant 0 : index
    %25 = vector.load %arg8[%c0_18, %c0_19, %c0_20] : memref<1x32x256xf32, #tpu.memory_space<vmem>>, vector<1x32x256xf32>
    tpu.vector_store %arg8[%c0_18, %c0_19, %c0_20], %24 {strides = array<i32>} : memref<1x32x256xf32, #tpu.memory_space<vmem>>, vector<1x32x256xf32>,
    %c0_21 = arith.constant 0 : index
    %c0_22 = arith.constant 0 : index
    %c0_23 = arith.constant 0 : index
    %26 = vector.load %arg8[%c0_21, %c0_22, %c0_23] : memref<1x32x256xf32, #tpu.memory_space<vmem>>, vector<1x32x256xf32>
    %cst_24 = arith.constant dense<0.000000e+00> : vector<1x256xf32>
    %27 = vector.multi_reduction <add>, %26, %cst_24 [1] : vector<1x32x256xf32> to vector<1x256xf32>
    %cst_25 = arith.constant 3.125000e-02 : f32
    %28 = vector.broadcast %cst_25 : f32 to vector<1x256xf32>
    %29 = arith.mulf %27, %28 : vector<1x256xf32>
    %cst_26 = arith.constant dense<0xFF800000> : vector<1x256xf32>
    %30 = vector.multi_reduction <maximumf>, %26, %cst_26 [1] : vector<1x32x256xf32> to vector<1x256xf32>
    %31 = vector.shape_cast %29 : vector<1x256xf32> to vector<1x1x256xf32>
    %32 = vector.shape_cast %30 : vector<1x256xf32> to vector<1x1x256xf32>
    %33 = tpu.concatenate %31, %32 in 0 : vector<1x1x256xf32>, vector<1x1x256xf32> -> vector<2x1x256xf32>
    %c0_27 = arith.constant 0 : index
    %c0_28 = arith.constant 0 : index
    %34 = vector.load %arg4[%c0_27, %c0_28] : memref<1x256xi32, #tpu.memory_space<vmem>>, vector<1x256xi32>
    %c0_29 = arith.constant 0 : index
    %c0_30 = arith.constant 0 : index
    %35 = vector.load %arg5[%c0_29, %c0_30] : memref<1x256xi32, #tpu.memory_space<vmem>>, vector<1x256xi32>
    %c1_i32 = arith.constant 1 : i32
    %36 = vector.broadcast %c1_i32 : i32 to vector<1x256xi32>
    %37 = arith.cmpi sge, %34, %36 : vector<1x256xi32>
    %c17_i32 = arith.constant 17 : i32
    %38 = vector.broadcast %c17_i32 : i32 to vector<1x256xi32>
    %39 = arith.cmpi slt, %34, %38 : vector<1x256xi32>
    %40 = arith.andi %37, %39 : vector<1x256xi1>
    %41 = arith.extui %40 : vector<1x256xi1> to vector<1x256xi32>
    %42 = arith.sitofp %41 : vector<1x256xi32> to vector<1x256xf32>
    %c0_i32 = arith.constant 0 : i32
    %43 = vector.broadcast %c0_i32 : i32 to vector<1x256xi32>
    %44 = arith.cmpi sge, %34, %43 : vector<1x256xi32>
    %c16_i32 = arith.constant 16 : i32
    %45 = vector.broadcast %c16_i32 : i32 to vector<1x256xi32>
    %46 = arith.cmpi slt, %34, %45 : vector<1x256xi32>
    %47 = arith.andi %44, %46 : vector<1x256xi1>
    %48 = arith.extui %47 : vector<1x256xi1> to vector<1x256xi32>
    %49 = arith.sitofp %48 : vector<1x256xi32> to vector<1x256xf32>
    %c-1_i32 = arith.constant -1 : i32
    %50 = vector.broadcast %c-1_i32 : i32 to vector<1x256xi32>
    %51 = arith.cmpi sge, %34, %50 : vector<1x256xi32>
    %c15_i32 = arith.constant 15 : i32
    %52 = vector.broadcast %c15_i32 : i32 to vector<1x256xi32>
    %53 = arith.cmpi slt, %34, %52 : vector<1x256xi32>
    %54 = arith.andi %51, %53 : vector<1x256xi1>
    %55 = arith.extui %54 : vector<1x256xi1> to vector<1x256xi32>
    %56 = arith.sitofp %55 : vector<1x256xi32> to vector<1x256xf32>
    %c1_i32_31 = arith.constant 1 : i32
    %57 = vector.broadcast %c1_i32_31 : i32 to vector<1x256xi32>
    %58 = arith.cmpi sge, %35, %57 : vector<1x256xi32>
    %c17_i32_32 = arith.constant 17 : i32
    %59 = vector.broadcast %c17_i32_32 : i32 to vector<1x256xi32>
    %60 = arith.cmpi slt, %35, %59 : vector<1x256xi32>
    %61 = arith.andi %58, %60 : vector<1x256xi1>
    %62 = arith.extui %61 : vector<1x256xi1> to vector<1x256xi32>
    %63 = arith.sitofp %62 : vector<1x256xi32> to vector<1x256xf32>
    %c0_i32_33 = arith.constant 0 : i32
    %64 = vector.broadcast %c0_i32_33 : i32 to vector<1x256xi32>
    %65 = arith.cmpi sge, %35, %64 : vector<1x256xi32>
    %c16_i32_34 = arith.constant 16 : i32
    %66 = vector.broadcast %c16_i32_34 : i32 to vector<1x256xi32>
    %67 = arith.cmpi slt, %35, %66 : vector<1x256xi32>
    %68 = arith.andi %65, %67 : vector<1x256xi1>
    %69 = arith.extui %68 : vector<1x256xi1> to vector<1x256xi32>
    %70 = arith.sitofp %69 : vector<1x256xi32> to vector<1x256xf32>
    %c-1_i32_35 = arith.constant -1 : i32
    %71 = vector.broadcast %c-1_i32_35 : i32 to vector<1x256xi32>
    %72 = arith.cmpi sge, %35, %71 : vector<1x256xi32>
    %c15_i32_36 = arith.constant 15 : i32
    %73 = vector.broadcast %c15_i32_36 : i32 to vector<1x256xi32>
    %74 = arith.cmpi slt, %35, %73 : vector<1x256xi32>
    %75 = arith.andi %72, %74 : vector<1x256xi1>
    %76 = arith.extui %75 : vector<1x256xi1> to vector<1x256xi32>
    %77 = arith.sitofp %76 : vector<1x256xi32> to vector<1x256xf32>
    %cst_37 = arith.constant 0.000000e+00 : f32
    %78 = vector.broadcast %cst_37 : f32 to vector<1x256xf32>
    %79 = vector.extract_strided_slice %33 {offsets = [0, 0, 239], sizes = [2, 1, 17], strides = [1, 1, 1]} : vector<2x1x256xf32> to vector<2x1x17xf32>
    %80 = vector.extract_strided_slice %33 {offsets = [0, 0, 0], sizes = [2, 1, 239], strides = [1, 1, 1]} : vector<2x1x256xf32> to vector<2x1x239xf32>
    %81 = tpu.concatenate %79, %80 in 2 : vector<2x1x17xf32>, vector<2x1x239xf32> -> vector<2x1x256xf32>
    %82 = arith.mulf %42, %63 : vector<1x256xf32>
    %c0_38 = arith.constant 0 : index
    %83 = memref.load %arg1[%c0_38] : memref<18xf32, #tpu.memory_space<smem>>
    %84 = vector.broadcast %83 : f32 to vector<1x256xf32>
    %85 = arith.mulf %82, %84 : vector<1x256xf32>
    %c9 = arith.constant 9 : index
    %86 = memref.load %arg1[%c9] : memref<18xf32, #tpu.memory_space<smem>>
    %87 = vector.broadcast %86 : f32 to vector<1x256xf32>
    %88 = arith.mulf %82, %87 : vector<1x256xf32>
    %89 = vector.extract_strided_slice %81 {offsets = [0, 0, 0], sizes = [1, 1, 256], strides = [1, 1, 1]} : vector<2x1x256xf32> to vector<1x1x256xf32>
    %90 = vector.shape_cast %89 : vector<1x1x256xf32> to vector<1x256xf32>
    %91 = arith.mulf %85, %90 : vector<1x256xf32>
    %92 = arith.addf %78, %91 : vector<1x256xf32>
    %93 = vector.extract_strided_slice %81 {offsets = [1, 0, 0], sizes = [1, 1, 256], strides = [1, 1, 1]} : vector<2x1x256xf32> to vector<1x1x256xf32>
    %94 = vector.shape_cast %93 : vector<1x1x256xf32> to vector<1x256xf32>
    %95 = arith.mulf %88, %94 : vector<1x256xf32>
    %96 = arith.addf %92, %95 : vector<1x256xf32>
    %97 = vector.extract_strided_slice %33 {offsets = [0, 0, 240], sizes = [2, 1, 16], strides = [1, 1, 1]} : vector<2x1x256xf32> to vector<2x1x16xf32>
    %98 = vector.extract_strided_slice %33 {offsets = [0, 0, 0], sizes = [2, 1, 240], strides = [1, 1, 1]} : vector<2x1x256xf32> to vector<2x1x240xf32>
    %99 = tpu.concatenate %97, %98 in 2 : vector<2x1x16xf32>, vector<2x1x240xf32> -> vector<2x1x256xf32>
    %100 = arith.mulf %42, %70 : vector<1x256xf32>
    %c1 = arith.constant 1 : index
    %101 = memref.load %arg1[%c1] : memref<18xf32, #tpu.memory_space<smem>>
    %102 = vector.broadcast %101 : f32 to vector<1x256xf32>
    %103 = arith.mulf %100, %102 : vector<1x256xf32>
    %c10 = arith.constant 10 : index
    %104 = memref.load %arg1[%c10] : memref<18xf32, #tpu.memory_space<smem>>
    %105 = vector.broadcast %104 : f32 to vector<1x256xf32>
    %106 = arith.mulf %100, %105 : vector<1x256xf32>
    %107 = vector.extract_strided_slice %99 {offsets = [0, 0, 0], sizes = [1, 1, 256], strides = [1, 1, 1]} : vector<2x1x256xf32> to vector<1x1x256xf32>
    %108 = vector.shape_cast %107 : vector<1x1x256xf32> to vector<1x256xf32>
    %109 = arith.mulf %103, %108 : vector<1x256xf32>
    %110 = arith.addf %96, %109 : vector<1x256xf32>
    %111 = vector.extract_strided_slice %99 {offsets = [1, 0, 0], sizes = [1, 1, 256], strides = [1, 1, 1]} : vector<2x1x256xf32> to vector<1x1x256xf32>
    %112 = vector.shape_cast %111 : vector<1x1x256xf32> to vector<1x256xf32>
    %113 = arith.mulf %106, %112 : vector<1x256xf32>
    %114 = arith.addf %110, %113 : vector<1x256xf32>
    %115 = vector.extract_strided_slice %33 {offsets = [0, 0, 241], sizes = [2, 1, 15], strides = [1, 1, 1]} : vector<2x1x256xf32> to vector<2x1x15xf32>
    %116 = vector.extract_strided_slice %33 {offsets = [0, 0, 0], sizes = [2, 1, 241], strides = [1, 1, 1]} : vector<2x1x256xf32> to vector<2x1x241xf32>
    %117 = tpu.concatenate %115, %116 in 2 : vector<2x1x15xf32>, vector<2x1x241xf32> -> vector<2x1x256xf32>
    %118 = arith.mulf %42, %77 : vector<1x256xf32>
    %c2 = arith.constant 2 : index
    %119 = memref.load %arg1[%c2] : memref<18xf32, #tpu.memory_space<smem>>
    %120 = vector.broadcast %119 : f32 to vector<1x256xf32>
    %121 = arith.mulf %118, %120 : vector<1x256xf32>
    %c11 = arith.constant 11 : index
    %122 = memref.load %arg1[%c11] : memref<18xf32, #tpu.memory_space<smem>>
    %123 = vector.broadcast %122 : f32 to vector<1x256xf32>
    %124 = arith.mulf %118, %123 : vector<1x256xf32>
    %125 = vector.extract_strided_slice %117 {offsets = [0, 0, 0], sizes = [1, 1, 256], strides = [1, 1, 1]} : vector<2x1x256xf32> to vector<1x1x256xf32>
    %126 = vector.shape_cast %125 : vector<1x1x256xf32> to vector<1x256xf32>
    %127 = arith.mulf %121, %126 : vector<1x256xf32>
    %128 = arith.addf %114, %127 : vector<1x256xf32>
    %129 = vector.extract_strided_slice %117 {offsets = [1, 0, 0], sizes = [1, 1, 256], strides = [1, 1, 1]} : vector<2x1x256xf32> to vector<1x1x256xf32>
    %130 = vector.shape_cast %129 : vector<1x1x256xf32> to vector<1x256xf32>
    %131 = arith.mulf %124, %130 : vector<1x256xf32>
    %132 = arith.addf %128, %131 : vector<1x256xf32>
    %133 = vector.extract_strided_slice %33 {offsets = [0, 0, 255], sizes = [2, 1, 1], strides = [1, 1, 1]} : vector<2x1x256xf32> to vector<2x1x1xf32>
    %134 = vector.extract_strided_slice %33 {offsets = [0, 0, 0], sizes = [2, 1, 255], strides = [1, 1, 1]} : vector<2x1x256xf32> to vector<2x1x255xf32>
    %135 = tpu.concatenate %133, %134 in 2 : vector<2x1x1xf32>, vector<2x1x255xf32> -> vector<2x1x256xf32>
    %136 = arith.mulf %49, %63 : vector<1x256xf32>
    %c3 = arith.constant 3 : index
    %137 = memref.load %arg1[%c3] : memref<18xf32, #tpu.memory_space<smem>>
    %138 = vector.broadcast %137 : f32 to vector<1x256xf32>
    %139 = arith.mulf %136, %138 : vector<1x256xf32>
    %c12 = arith.constant 12 : index
    %140 = memref.load %arg1[%c12] : memref<18xf32, #tpu.memory_space<smem>>
    %141 = vector.broadcast %140 : f32 to vector<1x256xf32>
    %142 = arith.mulf %136, %141 : vector<1x256xf32>
    %143 = vector.extract_strided_slice %135 {offsets = [0, 0, 0], sizes = [1, 1, 256], strides = [1, 1, 1]} : vector<2x1x256xf32> to vector<1x1x256xf32>
    %144 = vector.shape_cast %143 : vector<1x1x256xf32> to vector<1x256xf32>
    %145 = arith.mulf %139, %144 : vector<1x256xf32>
    %146 = arith.addf %132, %145 : vector<1x256xf32>
    %147 = vector.extract_strided_slice %135 {offsets = [1, 0, 0], sizes = [1, 1, 256], strides = [1, 1, 1]} : vector<2x1x256xf32> to vector<1x1x256xf32>
    %148 = vector.shape_cast %147 : vector<1x1x256xf32> to vector<1x256xf32>
    %149 = arith.mulf %142, %148 : vector<1x256xf32>
    %150 = arith.addf %146, %149 : vector<1x256xf32>
    %151 = arith.mulf %49, %70 : vector<1x256xf32>
    %c4 = arith.constant 4 : index
    %152 = memref.load %arg1[%c4] : memref<18xf32, #tpu.memory_space<smem>>
    %153 = vector.broadcast %152 : f32 to vector<1x256xf32>
    %154 = arith.mulf %151, %153 : vector<1x256xf32>
    %c13 = arith.constant 13 : index
    %155 = memref.load %arg1[%c13] : memref<18xf32, #tpu.memory_space<smem>>
    %156 = vector.broadcast %155 : f32 to vector<1x256xf32>
    %157 = arith.mulf %151, %156 : vector<1x256xf32>
    %158 = vector.extract_strided_slice %33 {offsets = [0, 0, 0], sizes = [1, 1, 256], strides = [1, 1, 1]} : vector<2x1x256xf32> to vector<1x1x256xf32>
    %159 = vector.shape_cast %158 : vector<1x1x256xf32> to vector<1x256xf32>
    %160 = arith.mulf %154, %159 : vector<1x256xf32>
    %161 = arith.addf %150, %160 : vector<1x256xf32>
    %162 = vector.extract_strided_slice %33 {offsets = [1, 0, 0], sizes = [1, 1, 256], strides = [1, 1, 1]} : vector<2x1x256xf32> to vector<1x1x256xf32>
    %163 = vector.shape_cast %162 : vector<1x1x256xf32> to vector<1x256xf32>
    %164 = arith.mulf %157, %163 : vector<1x256xf32>
    %165 = arith.addf %161, %164 : vector<1x256xf32>
    %166 = vector.extract_strided_slice %33 {offsets = [0, 0, 1], sizes = [2, 1, 255], strides = [1, 1, 1]} : vector<2x1x256xf32> to vector<2x1x255xf32>
    %167 = vector.extract_strided_slice %33 {offsets = [0, 0, 0], sizes = [2, 1, 1], strides = [1, 1, 1]} : vector<2x1x256xf32> to vector<2x1x1xf32>
    %168 = tpu.concatenate %166, %167 in 2 : vector<2x1x255xf32>, vector<2x1x1xf32> -> vector<2x1x256xf32>
    %169 = arith.mulf %49, %77 : vector<1x256xf32>
    %c5 = arith.constant 5 : index
    %170 = memref.load %arg1[%c5] : memref<18xf32, #tpu.memory_space<smem>>
    %171 = vector.broadcast %170 : f32 to vector<1x256xf32>
    %172 = arith.mulf %169, %171 : vector<1x256xf32>
    %c14 = arith.constant 14 : index
    %173 = memref.load %arg1[%c14] : memref<18xf32, #tpu.memory_space<smem>>
    %174 = vector.broadcast %173 : f32 to vector<1x256xf32>
    %175 = arith.mulf %169, %174 : vector<1x256xf32>
    %176 = vector.extract_strided_slice %168 {offsets = [0, 0, 0], sizes = [1, 1, 256], strides = [1, 1, 1]} : vector<2x1x256xf32> to vector<1x1x256xf32>
    %177 = vector.shape_cast %176 : vector<1x1x256xf32> to vector<1x256xf32>
    %178 = arith.mulf %172, %177 : vector<1x256xf32>
    %179 = arith.addf %165, %178 : vector<1x256xf32>
    %180 = vector.extract_strided_slice %168 {offsets = [1, 0, 0], sizes = [1, 1, 256], strides = [1, 1, 1]} : vector<2x1x256xf32> to vector<1x1x256xf32>
    %181 = vector.shape_cast %180 : vector<1x1x256xf32> to vector<1x256xf32>
    %182 = arith.mulf %175, %181 : vector<1x256xf32>
    %183 = arith.addf %179, %182 : vector<1x256xf32>
    %184 = vector.extract_strided_slice %33 {offsets = [0, 0, 15], sizes = [2, 1, 241], strides = [1, 1, 1]} : vector<2x1x256xf32> to vector<2x1x241xf32>
    %185 = vector.extract_strided_slice %33 {offsets = [0, 0, 0], sizes = [2, 1, 15], strides = [1, 1, 1]} : vector<2x1x256xf32> to vector<2x1x15xf32>
    %186 = tpu.concatenate %184, %185 in 2 : vector<2x1x241xf32>, vector<2x1x15xf32> -> vector<2x1x256xf32>
    %187 = arith.mulf %56, %63 : vector<1x256xf32>
    %c6 = arith.constant 6 : index
    %188 = memref.load %arg1[%c6] : memref<18xf32, #tpu.memory_space<smem>>
    %189 = vector.broadcast %188 : f32 to vector<1x256xf32>
    %190 = arith.mulf %187, %189 : vector<1x256xf32>
    %c15 = arith.constant 15 : index
    %191 = memref.load %arg1[%c15] : memref<18xf32, #tpu.memory_space<smem>>
    %192 = vector.broadcast %191 : f32 to vector<1x256xf32>
    %193 = arith.mulf %187, %192 : vector<1x256xf32>
    %194 = vector.extract_strided_slice %186 {offsets = [0, 0, 0], sizes = [1, 1, 256], strides = [1, 1, 1]} : vector<2x1x256xf32> to vector<1x1x256xf32>
    %195 = vector.shape_cast %194 : vector<1x1x256xf32> to vector<1x256xf32>
    %196 = arith.mulf %190, %195 : vector<1x256xf32>
    %197 = arith.addf %183, %196 : vector<1x256xf32>
    %198 = vector.extract_strided_slice %186 {offsets = [1, 0, 0], sizes = [1, 1, 256], strides = [1, 1, 1]} : vector<2x1x256xf32> to vector<1x1x256xf32>
    %199 = vector.shape_cast %198 : vector<1x1x256xf32> to vector<1x256xf32>
    %200 = arith.mulf %193, %199 : vector<1x256xf32>
    %201 = arith.addf %197, %200 : vector<1x256xf32>
    %202 = vector.extract_strided_slice %33 {offsets = [0, 0, 16], sizes = [2, 1, 240], strides = [1, 1, 1]} : vector<2x1x256xf32> to vector<2x1x240xf32>
    %203 = vector.extract_strided_slice %33 {offsets = [0, 0, 0], sizes = [2, 1, 16], strides = [1, 1, 1]} : vector<2x1x256xf32> to vector<2x1x16xf32>
    %204 = tpu.concatenate %202, %203 in 2 : vector<2x1x240xf32>, vector<2x1x16xf32> -> vector<2x1x256xf32>
    %205 = arith.mulf %56, %70 : vector<1x256xf32>
    %c7 = arith.constant 7 : index
    %206 = memref.load %arg1[%c7] : memref<18xf32, #tpu.memory_space<smem>>
    %207 = vector.broadcast %206 : f32 to vector<1x256xf32>
    %208 = arith.mulf %205, %207 : vector<1x256xf32>
    %c16 = arith.constant 16 : index
    %209 = memref.load %arg1[%c16] : memref<18xf32, #tpu.memory_space<smem>>
    %210 = vector.broadcast %209 : f32 to vector<1x256xf32>
    %211 = arith.mulf %205, %210 : vector<1x256xf32>
    %212 = vector.extract_strided_slice %204 {offsets = [0, 0, 0], sizes = [1, 1, 256], strides = [1, 1, 1]} : vector<2x1x256xf32> to vector<1x1x256xf32>
    %213 = vector.shape_cast %212 : vector<1x1x256xf32> to vector<1x256xf32>
    %214 = arith.mulf %208, %213 : vector<1x256xf32>
    %215 = arith.addf %201, %214 : vector<1x256xf32>
    %216 = vector.extract_strided_slice %204 {offsets = [1, 0, 0], sizes = [1, 1, 256], strides = [1, 1, 1]} : vector<2x1x256xf32> to vector<1x1x256xf32>
    %217 = vector.shape_cast %216 : vector<1x1x256xf32> to vector<1x256xf32>
    %218 = arith.mulf %211, %217 : vector<1x256xf32>
    %219 = arith.addf %215, %218 : vector<1x256xf32>
    %220 = vector.extract_strided_slice %33 {offsets = [0, 0, 17], sizes = [2, 1, 239], strides = [1, 1, 1]} : vector<2x1x256xf32> to vector<2x1x239xf32>
    %221 = vector.extract_strided_slice %33 {offsets = [0, 0, 0], sizes = [2, 1, 17], strides = [1, 1, 1]} : vector<2x1x256xf32> to vector<2x1x17xf32>
    %222 = tpu.concatenate %220, %221 in 2 : vector<2x1x239xf32>, vector<2x1x17xf32> -> vector<2x1x256xf32>
    %223 = arith.mulf %56, %77 : vector<1x256xf32>
    %c8 = arith.constant 8 : index
    %224 = memref.load %arg1[%c8] : memref<18xf32, #tpu.memory_space<smem>>
    %225 = vector.broadcast %224 : f32 to vector<1x256xf32>
    %226 = arith.mulf %223, %225 : vector<1x256xf32>
    %c17 = arith.constant 17 : index
    %227 = memref.load %arg1[%c17] : memref<18xf32, #tpu.memory_space<smem>>
    %228 = vector.broadcast %227 : f32 to vector<1x256xf32>
    %229 = arith.mulf %223, %228 : vector<1x256xf32>
    %230 = vector.extract_strided_slice %222 {offsets = [0, 0, 0], sizes = [1, 1, 256], strides = [1, 1, 1]} : vector<2x1x256xf32> to vector<1x1x256xf32>
    %231 = vector.shape_cast %230 : vector<1x1x256xf32> to vector<1x256xf32>
    %232 = arith.mulf %226, %231 : vector<1x256xf32>
    %233 = arith.addf %219, %232 : vector<1x256xf32>
    %234 = vector.extract_strided_slice %222 {offsets = [1, 0, 0], sizes = [1, 1, 256], strides = [1, 1, 1]} : vector<2x1x256xf32> to vector<1x1x256xf32>
    %235 = vector.shape_cast %234 : vector<1x1x256xf32> to vector<1x256xf32>
    %236 = arith.mulf %229, %235 : vector<1x256xf32>
    %237 = arith.addf %233, %236 : vector<1x256xf32>
    %238 = arith.negf %237 : vector<1x256xf32>
    %239 = math.exp %238 : vector<1x256xf32>
    %cst_39 = arith.constant 1.000000e+00 : f32
    %240 = vector.broadcast %cst_39 : f32 to vector<1x256xf32>
    %241 = arith.addf %240, %239 : vector<1x256xf32>
    %242 = arith.divf %240, %241 : vector<1x256xf32>
    %c0_40 = arith.constant 0 : index
    %c0_41 = arith.constant 0 : index
    %c0_42 = arith.constant 0 : index
    %243 = vector.load %arg8[%c0_40, %c0_41, %c0_42] : memref<1x32x256xf32, #tpu.memory_space<vmem>>, vector<1x32x256xf32>
    %244 = vector.shape_cast %242 : vector<1x256xf32> to vector<1x1x256xf32>
    %245 = vector.broadcast %244 : vector<1x1x256xf32> to vector<1x32x256xf32>
    %246 = arith.mulf %243, %245 : vector<1x32x256xf32>
    %c0_43 = arith.constant 0 : index
    %c0_44 = arith.constant 0 : index
    %c0_45 = arith.constant 0 : index
    %247 = vector.load %arg7[%c0_43, %c0_44, %c0_45] : memref<1x32x256xf32, #tpu.memory_space<vmem>>, vector<1x32x256xf32>
    tpu.vector_store %arg7[%c0_43, %c0_44, %c0_45], %246 {strides = array<i32>} : memref<1x32x256xf32, #tpu.memory_space<vmem>>, vector<1x32x256xf32>,
    return
  }
  func.func @transform_0(%arg0: i32) -> i32 {
    %c0_i32 = arith.constant 0 : i32
    %c0_i32_0 = arith.constant 0 : i32
    return %c0_i32 : i32
  }
  func.func @transform_1(%arg0: i32) -> (i32, i32) {
    %c0_i32 = arith.constant 0 : i32
    %c0_i32_0 = arith.constant 0 : i32
    %c0_i32_1 = arith.constant 0 : i32
    return %c0_i32, %c0_i32_0 : i32, i32
  }
  func.func @transform_2(%arg0: i32) -> (i32, i32) {
    %c0_i32 = arith.constant 0 : i32
    %c0_i32_0 = arith.constant 0 : i32
    %c0_i32_1 = arith.constant 0 : i32
    return %c0_i32, %c0_i32_0 : i32, i32
  }
  func.func @transform_3(%arg0: i32) -> (i32, i32) {
    %c0_i32 = arith.constant 0 : i32
    %c0_i32_0 = arith.constant 0 : i32
    %c0_i32_1 = arith.constant 0 : i32
    return %c0_i32, %c0_i32_0 : i32, i32
  }
  func.func @transform_4(%arg0: i32) -> (i32, i32) {
    %c0_i32 = arith.constant 0 : i32
    %c0_i32_0 = arith.constant 0 : i32
    %c0_i32_1 = arith.constant 0 : i32
    return %c0_i32, %c0_i32_0 : i32, i32
  }
  func.func @transform_5(%arg0: i32) -> (i32, i32, i32) {
    %c0_i32 = arith.constant 0 : i32
    %c0_i32_0 = arith.constant 0 : i32
    %c0_i32_1 = arith.constant 0 : i32
    return %arg0, %c0_i32, %c0_i32_0 : i32, i32, i32
  }
  func.func @transform_6(%arg0: i32) -> (i32, i32, i32) {
    %c0_i32 = arith.constant 0 : i32
    %c0_i32_0 = arith.constant 0 : i32
    %c0_i32_1 = arith.constant 0 : i32
    return %arg0, %c0_i32, %c0_i32_0 : i32, i32, i32
  }
}

</mosaic_0001>

<llo_original>
// kernel: tpu_custom_call.1
$region0: #{tpu_custom_call.1}
  #allocation0 [shape = 'u32[]', space=smem, size = 0x4, offset = 0x4, fixed_abs, tag = 'smem constant byte address 0x4 - core index']
  #allocation1 [shape = 'u32[144,128]{1,0:T(1,128)}', space=vmem, size = 0x12000, scoped, tag = 'internal scratch']
  #allocation2 [shape = 'f32[1,32,256]{2,1,0:T(8,128)}', space=vmem, size = 0x8000, scoped, tag = 'scratch operand']
  %s0 = inlined_call_operand.vmem [shape: f32[18], index: 0, kind: input, shape index: {}]
  %s1 = inlined_call_operand.vmem [shape: f32[32,2], index: 1, kind: input, shape index: {}]
  %s2 = inlined_call_operand.vmem [shape: f32[2,32], index: 2, kind: input, shape index: {}]
  %s3 = inlined_call_operand.vmem [shape: s32[1,256], index: 3, kind: input, shape index: {}]
  %s4 = inlined_call_operand.vmem [shape: s32[1,256], index: 4, kind: input, shape index: {}]
  %s5 = inlined_call_operand.hbm [shape: f32[2,32,256], index: 5, kind: input, shape index: {}]
  %s6 = inlined_call_operand.hbm [shape: f32[2,32,256], index: 6, kind: output, shape index: {}]
  %s7 = sld [smem:[#allocation0]]
  $region65: #{tpu_custom_call.1} parent=0
    _
  %s9 = ssub.s32 1, %s7
  %s10 = scalar_select 0, %s9, %s7
  $region1: #{tpu_custom_call.1} parent=0
    #allocation3 [shape = 'u8[512]{0}', space=smem, size = 0x200, scoped, tag = 'input window, operand 0, single buffered']
    #allocation4 [shape = 's32[2]{0}', space=sflag, size = 0x8, scoped, tag = 'scoped memory for tpu_custom_call.1']
    #allocation5 [shape = 's32[2]{0}', space=sflag, size = 0x8, scoped, tag = 'scoped memory for tpu_custom_call.1']
    #allocation6 [shape = 's32[2]{0}', space=sflag, size = 0x8, scoped, tag = 'scoped memory for tpu_custom_call.1']
    #allocation7 [shape = 'u8[65536]{0}', space=vmem, size = 0x10000, scoped, tag = 'input window, operand 5']
    #allocation8 [shape = 'u8[65536]{0}', space=vmem, size = 0x10000, scoped, tag = 'output window, operand 0']
    %11 = vsyncpa [#allocation6], 0
    %12 = vsyncpa [#allocation4], 0
    %s13 = scalar_lea.sflag [#allocation4], 1
    %14 = vsyncpa %s13, 0
    %15 = vsyncpa [#allocation5], 0
    %s16 = scalar_lea.sflag [#allocation5], 1
    %17 = vsyncpa %s16, 0
    loop: start=0, step=1, limit=4
    $region2: #{tpu_custom_call.1} parent=1 // loop_pre_header
      _
    $region3: #{tpu_custom_call.1} parent=1 // loop_header
      %s19 = sphi 0, %s23
      %p20 = scmp.ge.s32.totalorder %s19, 4
      %s27 = sphi 0, %s27
      %s29 = sphi 0, %s27
      %s30 = sphi 0, %s29
      %s44 = sphi 0, %s30
      %s48 = sphi 0, %s48
      %s50 = sphi 0, %s48
      %s51 = sphi 0, %s50
      %s65 = sphi 0, %s51
      %s69 = sphi 0, %s69
      %s71 = sphi 0, %s69
      %s72 = sphi 0, %s71
      %s86 = sphi 0, %s72
      %s90 = sphi 0, %s90
      %s92 = sphi 0, %s90
      %s93 = sphi 0, %s92
      %s107 = sphi 0, %s93
      %s111 = sphi 0, %s111
      %s113 = sphi 0, %s111
      %s114 = sphi 0, %s113
      %s128 = sphi 0, %s114
      %s134 = sphi 0, %s136
      %s137 = sphi 0, %s134
      %s138 = sphi 0, %s137
      %s154 = sphi 0, %s138
      %s160 = sphi 0, %s162
      %s163 = sphi 0, %s160
      %s164 = sphi 0, %s163
      %s180 = sphi 0, %s164
    $region4: #{tpu_custom_call.1} parent=1 // loop_header_branch
      %22 = sbr.rel (%p20) target = $region8
    $region5: #{tpu_custom_call.1} parent=1 // loop_body
      %s24 = ssub.s32 %s19, 1
      %s25 = ssub.s32 %s19, 2
      %s26 = sadd.s32 %s19, 1
      %s28 = sadd.s32 %s27, 1
      %p31 = scmp.eq.s32.totalorder %s19, 1
      %p32 = scmp.ne.s32.totalorder %s27, %s29
      %p33 = scmp.eq.s32.totalorder %s19, 0
      %p34 = por %p32, %p33
      %p35 = scmp.ne.s32.totalorder %s27, %s29
      %p36 = scmp.eq.s32.totalorder %s24, 1
      %p37 = por %p35, %p36
      %p38 = scmp.ne.s32.totalorder %s29, %s30
      %p39 = scmp.eq.s32.totalorder %s24, 0
      %p40 = por %p38, %p39
      %p41 = scmp.ne.s32.totalorder %s29, %s30
      %p42 = scmp.eq.s32.totalorder %s25, 1
      %p43 = por %p41, %p42
      %p45 = scmp.ne.s32.totalorder %s30, %s44
      %p46 = scmp.eq.s32.totalorder %s25, 0
      %p47 = por %p45, %p46
      %s49 = sadd.s32 %s48, 1
      %p52 = scmp.eq.s32.totalorder %s19, 1
      %p53 = scmp.ne.s32.totalorder %s48, %s50
      %p54 = scmp.eq.s32.totalorder %s19, 0
      %p55 = por %p53, %p54
      %p56 = scmp.ne.s32.totalorder %s48, %s50
      %p57 = scmp.eq.s32.totalorder %s24, 1
      %p58 = por %p56, %p57
      %p59 = scmp.ne.s32.totalorder %s50, %s51
      %p60 = scmp.eq.s32.totalorder %s24, 0
      %p61 = por %p59, %p60
      %p62 = scmp.ne.s32.totalorder %s50, %s51
      %p63 = scmp.eq.s32.totalorder %s25, 1
      %p64 = por %p62, %p63
      %p66 = scmp.ne.s32.totalorder %s51, %s65
      %p67 = scmp.eq.s32.totalorder %s25, 0
      %p68 = por %p66, %p67
      %s70 = sadd.s32 %s69, 1
      %p73 = scmp.eq.s32.totalorder %s19, 1
      %p74 = scmp.ne.s32.totalorder %s69, %s71
      %p75 = scmp.eq.s32.totalorder %s19, 0
      %p76 = por %p74, %p75
      %p77 = scmp.ne.s32.totalorder %s69, %s71
      %p78 = scmp.eq.s32.totalorder %s24, 1
      %p79 = por %p77, %p78
      %p80 = scmp.ne.s32.totalorder %s71, %s72
      %p81 = scmp.eq.s32.totalorder %s24, 0
      %p82 = por %p80, %p81
      %p83 = scmp.ne.s32.totalorder %s71, %s72
      %p84 = scmp.eq.s32.totalorder %s25, 1
      %p85 = por %p83, %p84
      %p87 = scmp.ne.s32.totalorder %s72, %s86
      %p88 = scmp.eq.s32.totalorder %s25, 0
      %p89 = por %p87, %p88
      %s91 = sadd.s32 %s90, 1
      %p94 = scmp.eq.s32.totalorder %s19, 1
      %p95 = scmp.ne.s32.totalorder %s90, %s92
      %p96 = scmp.eq.s32.totalorder %s19, 0
      %p97 = por %p95, %p96
      %p98 = scmp.ne.s32.totalorder %s90, %s92
      %p99 = scmp.eq.s32.totalorder %s24, 1
      %p100 = por %p98, %p99
      %p101 = scmp.ne.s32.totalorder %s92, %s93
      %p102 = scmp.eq.s32.totalorder %s24, 0
      %p103 = por %p101, %p102
      %p104 = scmp.ne.s32.totalorder %s92, %s93
      %p105 = scmp.eq.s32.totalorder %s25, 1
      %p106 = por %p104, %p105
      %p108 = scmp.ne.s32.totalorder %s93, %s107
      %p109 = scmp.eq.s32.totalorder %s25, 0
      %p110 = por %p108, %p109
      %s112 = sadd.s32 %s111, 1
      %p115 = scmp.eq.s32.totalorder %s19, 1
      %p116 = scmp.ne.s32.totalorder %s111, %s113
      %p117 = scmp.eq.s32.totalorder %s19, 0
      %p118 = por %p116, %p117
      %p119 = scmp.ne.s32.totalorder %s111, %s113
      %p120 = scmp.eq.s32.totalorder %s24, 1
      %p121 = por %p119, %p120
      %p122 = scmp.ne.s32.totalorder %s113, %s114
      %p123 = scmp.eq.s32.totalorder %s24, 0
      %p124 = por %p122, %p123
      %p125 = scmp.ne.s32.totalorder %s113, %s114
      %p126 = scmp.eq.s32.totalorder %s25, 1
      %p127 = por %p125, %p126
      %p129 = scmp.ne.s32.totalorder %s114, %s128
      %p130 = scmp.eq.s32.totalorder %s25, 0
      %p131 = por %p129, %p130
      %s132 = ssub.s32 %s19, %s26
      %p133 = scmp.eq.s32.totalorder %s132, 0
      %s135 = sadd.s32 %s134, 1
      %s136 = scalar_select %p133, %s134, %s135
      %p139 = pneg %p133
      %p140 = scmp.eq.s32.totalorder %s19, 1
      %p141 = por %p139, %p140
      %p142 = scmp.ne.s32.totalorder %s134, %s137
      %p143 = scmp.eq.s32.totalorder %s19, 0
      %p144 = por %p142, %p143
      %p145 = scmp.ne.s32.totalorder %s134, %s137
      %p146 = scmp.eq.s32.totalorder %s24, 1
      %p147 = por %p145, %p146
      %p148 = scmp.ne.s32.totalorder %s137, %s138
      %p149 = scmp.eq.s32.totalorder %s24, 0
      %p150 = por %p148, %p149
      %p151 = scmp.ne.s32.totalorder %s137, %s138
      %p152 = scmp.eq.s32.totalorder %s25, 1
      %p153 = por %p151, %p152
      %p155 = scmp.ne.s32.totalorder %s138, %s154
      %p156 = scmp.eq.s32.totalorder %s25, 0
      %p157 = por %p155, %p156
      %s158 = ssub.s32 %s19, %s26
      %p159 = scmp.eq.s32.totalorder %s158, 0
      %s161 = sadd.s32 %s160, 1
      %s162 = scalar_select %p159, %s160, %s161
      %p165 = pneg %p159
      %p166 = scmp.eq.s32.totalorder %s19, 1
      %p167 = por %p165, %p166
      %p168 = scmp.ne.s32.totalorder %s160, %s163
      %p169 = scmp.eq.s32.totalorder %s19, 0
      %p170 = por %p168, %p169
      %p171 = scmp.ne.s32.totalorder %s160, %s163
      %p172 = scmp.eq.s32.totalorder %s24, 1
      %p173 = por %p171, %p172
      %p174 = scmp.ne.s32.totalorder %s163, %s164
      %p175 = scmp.eq.s32.totalorder %s24, 0
      %p176 = por %p174, %p175
      %p177 = scmp.ne.s32.totalorder %s163, %s164
      %p178 = scmp.eq.s32.totalorder %s25, 1
      %p179 = por %p177, %p178
      %p181 = scmp.ne.s32.totalorder %s164, %s180
      %p182 = scmp.eq.s32.totalorder %s25, 0
      %p183 = por %p181, %p182
      %p184 = scmp.le.s32.totalorder 1, %s19
      %p185 = scmp.lt.s32.totalorder %s19, 3
      %p186 = pnand %p184, %p185
      %p187 = pneg %p186
      // Predicated region
      $region9: #{tpu_custom_call.1} parent=5 // pred_check
        _
      $region10: #{tpu_custom_call.1} parent=5 // pred_check_branch
        %189 = sbr.rel (%p186) target = $region12
      $region11: #{tpu_custom_call.1} parent=5 // pred_region
        %s190 = ssub.s32 %s19, 1
        // Predicated region
        $region13: #{tpu_custom_call.1} parent=11 // pred_check
          %p191 = pneg %p40
        $region14: #{tpu_custom_call.1} parent=11 // pred_check_branch
          %193 = sbr.rel (%p191) target = $region16
        $region15: #{tpu_custom_call.1} parent=11 // pred_region
          %s195 = ssub.s32 16, 16
          %196 = vsyncadd [#allocation6], %s195
          %s198 = sshll.u32 %s0, 4
          %s199 = int_to_ptr.vmem [resolvable:$true] %s198
          %201 = dma.vmem_to_smem %s199, 16, [#allocation3], [#allocation6]
        $region16: #{tpu_custom_call.1} parent=11 // pred_fallthru
          _
        // Predicated region
        $region17: #{tpu_custom_call.1} parent=11 // pred_check
          %p202 = pneg %p61
        $region18: #{tpu_custom_call.1} parent=11 // pred_check_branch
          %204 = sbr.rel (%p202) target = $region20
        $region19: #{tpu_custom_call.1} parent=11 // pred_region
          _
        $region20: #{tpu_custom_call.1} parent=11 // pred_fallthru
          _
        // Predicated region
        $region21: #{tpu_custom_call.1} parent=11 // pred_check
          %p205 = pneg %p82
        $region22: #{tpu_custom_call.1} parent=11 // pred_check_branch
          %207 = sbr.rel (%p205) target = $region24
        $region23: #{tpu_custom_call.1} parent=11 // pred_region
          _
        $region24: #{tpu_custom_call.1} parent=11 // pred_fallthru
          _
        // Predicated region
        $region25: #{tpu_custom_call.1} parent=11 // pred_check
          %p208 = pneg %p103
        $region26: #{tpu_custom_call.1} parent=11 // pred_check_branch
          %210 = sbr.rel (%p208) target = $region28
        $region27: #{tpu_custom_call.1} parent=11 // pred_region
          _
        $region28: #{tpu_custom_call.1} parent=11 // pred_fallthru
          _
        // Predicated region
        $region29: #{tpu_custom_call.1} parent=11 // pred_check
          %p211 = pneg %p124
        $region30: #{tpu_custom_call.1} parent=11 // pred_check_branch
          %213 = sbr.rel (%p211) target = $region32
        $region31: #{tpu_custom_call.1} parent=11 // pred_region
          _
        $region32: #{tpu_custom_call.1} parent=11 // pred_fallthru
          _
      $region12: #{tpu_custom_call.1} parent=5 // pred_fallthru
        _
      %p214 = scmp.lt.s32.totalorder %s19, 2
      // Predicated region
      $region33: #{tpu_custom_call.1} parent=5 // pred_check
        %p215 = pneg %p214
      $region34: #{tpu_custom_call.1} parent=5 // pred_check_branch
        %217 = sbr.rel (%p215) target = $region36
      $region35: #{tpu_custom_call.1} parent=5 // pred_region
        // Predicated region
        $region37: #{tpu_custom_call.1} parent=35 // pred_check
          %p218 = pneg %p144
        $region38: #{tpu_custom_call.1} parent=35 // pred_check_branch
          %220 = sbr.rel (%p218) target = $region40
        $region39: #{tpu_custom_call.1} parent=35 // pred_region
          %s221 = sand.u32 %s134, 1
          %s222 = scalar_lea.sflag [#allocation4], %s221
          %s223 = sand.u32 %s134, 1
          %s224 = smul.addr %s223, 64
          %s225 = scalar_lea.vmem [#allocation7], %s224
          %s227 = ssub.s32 1024, 1024
          %228 = vsyncadd %s222, %s227
          %s229 = smul.addr %s19, 8
          %s230 = smul.addr %s229, 128
          %s231 = scalar_lea.hbm %s5, %s230
          %s232 = sshll.u32 %s225, 4
          %s233 = int_to_ptr.vmem [resolvable:$true] %s232
          %238 = dma.hbm_to_vmem [thread:$0]  %s231, 1024, %s233, %s222, 256, 256, 16
        $region40: #{tpu_custom_call.1} parent=35 // pred_fallthru
          _
      $region36: #{tpu_custom_call.1} parent=5 // pred_fallthru
        _
      %p239 = scmp.le.s32.totalorder 1, %s19
      %p240 = scmp.lt.s32.totalorder %s19, 3
      %p241 = pnand %p239, %p240
      %p242 = pneg %p241
      // Predicated region
      $region41: #{tpu_custom_call.1} parent=5 // pred_check
        _
      $region42: #{tpu_custom_call.1} parent=5 // pred_check_branch
        %244 = sbr.rel (%p241) target = $region44
      $region43: #{tpu_custom_call.1} parent=5 // pred_region
        %s245 = ssub.s32 %s19, 1
        // Predicated region
        $region45: #{tpu_custom_call.1} parent=43 // pred_check
          %p246 = pneg %p40
        $region46: #{tpu_custom_call.1} parent=43 // pred_check_branch
          %248 = sbr.rel (%p246) target = $region48
        $region47: #{tpu_custom_call.1} parent=43 // pred_region
          %249 = dma.done [#allocation6], 16
        $region48: #{tpu_custom_call.1} parent=43 // pred_fallthru
          _
        %s250 = sand.u32 %s137, 1
        %s251 = scalar_lea.sflag [#allocation4], %s250
        %s252 = sand.u32 %s137, 1
        %s253 = smul.addr %s252, 64
        %s254 = scalar_lea.vmem [#allocation7], %s253
        // Predicated region
        $region49: #{tpu_custom_call.1} parent=43 // pred_check
          %p255 = pneg %p150
        $region50: #{tpu_custom_call.1} parent=43 // pred_check_branch
          %257 = sbr.rel (%p255) target = $region52
        $region51: #{tpu_custom_call.1} parent=43 // pred_region
          %258 = dma.done %s251, 1024
        $region52: #{tpu_custom_call.1} parent=43 // pred_fallthru
          _
        %259 = sfence
        %p260 = pneg %p40
        %p261 = pneg %p37
        %p262 = pneg %p61
        %p263 = pneg %p58
        %p264 = pneg %p82
        %p265 = pneg %p79
        %p266 = pneg %p103
        %p267 = pneg %p100
        %p268 = pneg %p124
        %p269 = pneg %p121
        %s270 = sand.u32 %s137, 1
        %s271 = scalar_lea.sflag [#allocation4], %s270
        %s272 = sand.u32 %s137, 1
        %s273 = smul.addr %s272, 64
        %s274 = scalar_lea.vmem [#allocation7], %s273
        %p275 = pneg %p150
        %p276 = pneg %p147
        %p277 = pneg %p176
        %p278 = pneg %p173
        %s279 = sand.u32 %s163, 1
        %s280 = scalar_lea.sflag [#allocation5], %s279
        %s281 = sand.u32 %s163, 1
        %s282 = smul.addr %s281, 64
        %s283 = scalar_lea.vmem [#allocation8], %s282
        %v284 = vld [vmem:[%s254] sm:$0xff]
        %v285 = vld [vmem:[%s254 + $0x8] sm:$0xff]
        %v286 = vld [vmem:[%s254 + $0x10] sm:$0xff]
        %v287 = vld [vmem:[%s254 + $0x18] sm:$0xff]
        %v288 = vld [vmem:[%s254 + $0x20] sm:$0xff]
        %v289 = vld [vmem:[%s254 + $0x28] sm:$0xff]
        %v290 = vld [vmem:[%s254 + $0x30] sm:$0xff]
        %v291 = vld [vmem:[%s254 + $0x38] sm:$0xff]
        %v292 = vadd.f32 %v284, %v285
        %293 = vadd.xlane.f32.xlu0 %v292
        %v294 = vpop.xlane.xlu0 %293
        %v295 = vadd.f32 %v286, %v287
        %296 = vadd.xlane.f32.xlu0 %v295
        %v297 = vpop.xlane.xlu0 %296
        %v298 = vadd.f32 %v288, %v289
        %299 = vadd.xlane.f32.xlu0 %v298
        %v300 = vpop.xlane.xlu0 %299
        %v301 = vadd.f32 %v290, %v291
        %302 = vadd.xlane.f32.xlu0 %v301
        %v303 = vpop.xlane.xlu0 %302
        %v304 = vmul.f32 %v294, 0.00390625
        %v305 = vmul.f32 %v297, 0.00390625
        %v306 = vmul.f32 %v300, 0.00390625
        %v307 = vmul.f32 %v303, 0.00390625
        %v308 = vmax.f32 %v284, %v285
        %309 = vmax.xlane.f32.xlu0 %v308
        %v310 = vpop.xlane.xlu0 %309
        %v311 = vmax.f32 %v286, %v287
        %312 = vmax.xlane.f32.xlu0 %v311
        %v313 = vpop.xlane.xlu0 %312
        %v314 = vmax.f32 %v288, %v289
        %315 = vmax.xlane.f32.xlu0 %v314
        %v316 = vpop.xlane.xlu0 %315
        %v317 = vmax.f32 %v290, %v291
        %318 = vmax.xlane.f32.xlu0 %v317
        %v319 = vpop.xlane.xlu0 %318
        %v320 = vld [vmem:[%s1] sm:$0xff]
        %v321 = vld [vmem:[%s1 + $0x8] sm:$0xff]
        %v322 = vld [vmem:[%s1 + $0x10] sm:$0xff]
        %v323 = vld [vmem:[%s1 + $0x18] sm:$0xff]
        %v324 = vld [vmem:[%s2] sm:$0x3]
        %v329 = vlaneseq
        %v330 = vand.u32 %v329, 127
        %v331 = vlaneseq
        %v332 = vshrl.u32 %v331, 7
        %v333 = vsub.s32 %v330, %v332
        %v334 = vrot.slane %v304, %v333
        %v335 = vadd.s32 %v330, 4294967288
        %v336 = vlaneseq
        %v337 = vshrl.u32 %v336, 7
        %v338 = vsub.s32 %v335, %v337
        %v339 = vrot.slane %v305, %v338
        %vm340 = vcmask 130112
        %v341 = vsel %vm340, %v339, %v334
        %v342 = vadd.s32 %v330, 4294967280
        %v343 = vlaneseq
        %v344 = vshrl.u32 %v343, 7
        %v345 = vsub.s32 %v342, %v344
        %v346 = vrot.slane %v306, %v345
        %vm347 = vcmask 195712
        %v348 = vsel %vm347, %v346, %v341
        %v349 = vadd.s32 %v330, 4294967272
        %v350 = vlaneseq
        %v351 = vshrl.u32 %v350, 7
        %v352 = vsub.s32 %v349, %v351
        %v353 = vrot.slane %v307, %v352
        %vm354 = vcmask 261312
        %v355 = vsel %vm354, %v353, %v348
        %vm356 = vcmask 261120
        %v357 = vsel %vm356, %v355, 0
        %359 = vmatprep.subr.mxu0 0.0
        %360 = vmatpush1.msra.mxu0 %v320
        %361 = vmatprep.subr.mxu0 0.0
        %362 = vmatpush1.msra.mxu0 %v321
        %363 = vmatprep.subr.mxu0 0.0
        %364 = vmatpush1.msra.mxu0 %v322
        %365 = vmatprep.subr.mxu0 0.0
        %366 = vmatpush1.msra.mxu0 %v323
        %367 = vmatprep.subr.mxu0 0.0
        %368 = vmatpush1.msra.mxu0 0.0
        %369 = vmatprep.subr.mxu0 0.0
        %370 = vmatpush1.msra.mxu0 0.0
        %371 = vmatprep.subr.mxu0 0.0
        %372 = vmatpush1.msra.mxu0 0.0
        %373 = vmatprep.subr.mxu0 0.0
        %374 = vmatpush1.msra.mxu0 0.0
        %375 = vmatprep.subr.mxu0 0.0
        %376 = vmatpush1.msra.mxu0 0.0
        %377 = vmatprep.subr.mxu0 0.0
        %378 = vmatpush1.msra.mxu0 0.0
        %379 = vmatprep.subr.mxu0 0.0
        %380 = vmatpush1.msra.mxu0 0.0
        %381 = vmatprep.subr.mxu0 0.0
        %382 = vmatpush1.msra.mxu0 0.0
        %383 = vmatprep.subr.mxu0 0.0
        %384 = vmatpush1.msra.mxu0 0.0
        %385 = vmatprep.subr.mxu0 0.0
        %386 = vmatpush1.msra.mxu0 0.0
        %387 = vmatprep.subr.mxu0 0.0
        %388 = vmatpush1.msra.mxu0 0.0
        %389 = vmatprep.subr.mxu0 0.0
        %390 = vmatpush1.msra.mxu0 0.0
        %391 = vmatprep.subr.mxu0 0.0
        %392 = vmatpush1.msra.mxu0 0.0
        %393 = vmatprep.subr.mxu0 0.0
        %394 = vmatpush1.msra.mxu0 0.0
        %395 = vmatprep.subr.mxu0 0.0
        %396 = vmatpush1.msra.mxu0 0.0
        %397 = vmatprep.subr.mxu0 0.0
        %398 = vmatpush1.msra.mxu0 0.0
        %399 = vmatprep.subr.mxu0 0.0
        %400 = vmatpush1.msra.mxu0 0.0
        %401 = vmatprep.subr.mxu0 0.0
        %402 = vmatpush1.msra.mxu0 0.0
        %403 = vmatprep.subr.mxu0 0.0
        %404 = vmatpush1.msra.mxu0 0.0
        %405 = vmatprep.subr.mxu0 0.0
        %406 = vmatpush1.msra.mxu0 0.0
        %407 = vmatprep.subr.mxu0 0.0
        %408 = vmatpush1.msra.mxu0 0.0
        %409 = vmatprep.subr.mxu0 0.0
        %410 = vmatpush1.msra.mxu0 0.0
        %411 = vmatprep.subr.mxu0 0.0
        %412 = vmatpush1.msra.mxu0 0.0
        %413 = vmatprep.subr.mxu0 0.0
        %414 = vmatpush1.msra.mxu0 0.0
        %415 = vmatprep.subr.mxu0 0.0
        %416 = vmatpush1.msra.mxu0 0.0
        %417 = vmatprep.subr.mxu0 0.0
        %418 = vmatpush1.msra.mxu0 0.0
        %419 = vmatprep.subr.mxu0 0.0
        %420 = vmatpush1.msra.mxu0 0.0
        %421 = vmatprep.subr.mxu0 0.0
        %422 = vmatpush1.msra.mxu0 0.0
        %423 = vmatprep.mubr.f32.mxu0 0.0
        %424 = vmatmul.mubr.f32.gmra.mrb[0].mxu0 %v357
        %v425 = vpop.f32.mrb[0].mxu0
        %v426 = vadd.f32 0.0, %v425
        %v427 = vpop.f32.mrb[0].mxu0
        %428 = vdwg.mxu0
        %v429 = vmax.f32 %v426, 0.0
        %v434 = vlaneseq
        %v435 = vshrl.u32 %v434, 7
        %v436 = vsub.s32 %v330, %v435
        %v437 = vrot.slane %v310, %v436
        %v438 = vlaneseq
        %v439 = vshrl.u32 %v438, 7
        %v440 = vsub.s32 %v335, %v439
        %v441 = vrot.slane %v313, %v440
        %v442 = vsel %vm340, %v441, %v437
        %v443 = vlaneseq
        %v444 = vshrl.u32 %v443, 7
        %v445 = vsub.s32 %v342, %v444
        %v446 = vrot.slane %v316, %v445
        %v447 = vsel %vm347, %v446, %v442
        %v448 = vlaneseq
        %v449 = vshrl.u32 %v448, 7
        %v450 = vsub.s32 %v349, %v449
        %v451 = vrot.slane %v319, %v450
        %v452 = vsel %vm354, %v451, %v447
        %v453 = vsel %vm356, %v452, 0
        %455 = vmatprep.subr.mxu0 0.0
        %456 = vmatpush1.msra.mxu0 %v320
        %457 = vmatprep.subr.mxu0 0.0
        %458 = vmatpush1.msra.mxu0 %v321
        %459 = vmatprep.subr.mxu0 0.0
        %460 = vmatpush1.msra.mxu0 %v322
        %461 = vmatprep.subr.mxu0 0.0
        %462 = vmatpush1.msra.mxu0 %v323
        %463 = vmatprep.subr.mxu0 0.0
        %464 = vmatpush1.msra.mxu0 0.0
        %465 = vmatprep.subr.mxu0 0.0
        %466 = vmatpush1.msra.mxu0 0.0
        %467 = vmatprep.subr.mxu0 0.0
        %468 = vmatpush1.msra.mxu0 0.0
        %469 = vmatprep.subr.mxu0 0.0
        %470 = vmatpush1.msra.mxu0 0.0
        %471 = vmatprep.subr.mxu0 0.0
        %472 = vmatpush1.msra.mxu0 0.0
        %473 = vmatprep.subr.mxu0 0.0
        %474 = vmatpush1.msra.mxu0 0.0
        %475 = vmatprep.subr.mxu0 0.0
        %476 = vmatpush1.msra.mxu0 0.0
        %477 = vmatprep.subr.mxu0 0.0
        %478 = vmatpush1.msra.mxu0 0.0
        %479 = vmatprep.subr.mxu0 0.0
        %480 = vmatpush1.msra.mxu0 0.0
        %481 = vmatprep.subr.mxu0 0.0
        %482 = vmatpush1.msra.mxu0 0.0
        %483 = vmatprep.subr.mxu0 0.0
        %484 = vmatpush1.msra.mxu0 0.0
        %485 = vmatprep.subr.mxu0 0.0
        %486 = vmatpush1.msra.mxu0 0.0
        %487 = vmatprep.subr.mxu0 0.0
        %488 = vmatpush1.msra.mxu0 0.0
        %489 = vmatprep.subr.mxu0 0.0
        %490 = vmatpush1.msra.mxu0 0.0
        %491 = vmatprep.subr.mxu0 0.0
        %492 = vmatpush1.msra.mxu0 0.0
        %493 = vmatprep.subr.mxu0 0.0
        %494 = vmatpush1.msra.mxu0 0.0
        %495 = vmatprep.subr.mxu0 0.0
        %496 = vmatpush1.msra.mxu0 0.0
        %497 = vmatprep.subr.mxu0 0.0
        %498 = vmatpush1.msra.mxu0 0.0
        %499 = vmatprep.subr.mxu0 0.0
        %500 = vmatpush1.msra.mxu0 0.0
        %501 = vmatprep.subr.mxu0 0.0
        %502 = vmatpush1.msra.mxu0 0.0
        %503 = vmatprep.subr.mxu0 0.0
        %504 = vmatpush1.msra.mxu0 0.0
        %505 = vmatprep.subr.mxu0 0.0
        %506 = vmatpush1.msra.mxu0 0.0
        %507 = vmatprep.subr.mxu0 0.0
        %508 = vmatpush1.msra.mxu0 0.0
        %509 = vmatprep.subr.mxu0 0.0
        %510 = vmatpush1.msra.mxu0 0.0
        %511 = vmatprep.subr.mxu0 0.0
        %512 = vmatpush1.msra.mxu0 0.0
        %513 = vmatprep.subr.mxu0 0.0
        %514 = vmatpush1.msra.mxu0 0.0
        %515 = vmatprep.subr.mxu0 0.0
        %516 = vmatpush1.msra.mxu0 0.0
        %517 = vmatprep.subr.mxu0 0.0
        %518 = vmatpush1.msra.mxu0 0.0
        %519 = vmatprep.mubr.f32.mxu0 0.0
        %520 = vmatmul.mubr.f32.gmra.mrb[0].mxu0 %v453
        %v521 = vpop.f32.mrb[0].mxu0
        %v522 = vadd.f32 0.0, %v521
        %v523 = vpop.f32.mrb[0].mxu0
        %524 = vdwg.mxu0
        %v525 = vmax.f32 %v522, 0.0
        %vm526 = vcmask 15360
        %v528 = vsel %vm526, %v525, 0
        %vm530 = vcmask 1041408
        %v532 = vsel %vm530, %v324, 0
        %534 = vmatprep.subr.mxu0 0.0
        %535 = vmatpush1.msra.mxu0 %v532
        %536 = vmatprep.subr.mxu0 0.0
        %537 = vmatpush1.msra.mxu0 0.0
        %538 = vmatprep.subr.mxu0 0.0
        %539 = vmatpush1.msra.mxu0 0.0
        %540 = vmatprep.subr.mxu0 0.0
        %541 = vmatpush1.msra.mxu0 0.0
        %542 = vmatprep.subr.mxu0 0.0
        %543 = vmatpush1.msra.mxu0 0.0
        %544 = vmatprep.subr.mxu0 0.0
        %545 = vmatpush1.msra.mxu0 0.0
        %546 = vmatprep.subr.mxu0 0.0
        %547 = vmatpush1.msra.mxu0 0.0
        %548 = vmatprep.subr.mxu0 0.0
        %549 = vmatpush1.msra.mxu0 0.0
        %550 = vmatprep.subr.mxu0 0.0
        %551 = vmatpush1.msra.mxu0 0.0
        %552 = vmatprep.subr.mxu0 0.0
        %553 = vmatpush1.msra.mxu0 0.0
        %554 = vmatprep.subr.mxu0 0.0
        %555 = vmatpush1.msra.mxu0 0.0
        %556 = vmatprep.subr.mxu0 0.0
        %557 = vmatpush1.msra.mxu0 0.0
        %558 = vmatprep.subr.mxu0 0.0
        %559 = vmatpush1.msra.mxu0 0.0
        %560 = vmatprep.subr.mxu0 0.0
        %561 = vmatpush1.msra.mxu0 0.0
        %562 = vmatprep.subr.mxu0 0.0
        %563 = vmatpush1.msra.mxu0 0.0
        %564 = vmatprep.subr.mxu0 0.0
        %565 = vmatpush1.msra.mxu0 0.0
        %566 = vmatprep.subr.mxu0 0.0
        %567 = vmatpush1.msra.mxu0 0.0
        %568 = vmatprep.subr.mxu0 0.0
        %569 = vmatpush1.msra.mxu0 0.0
        %570 = vmatprep.subr.mxu0 0.0
        %571 = vmatpush1.msra.mxu0 0.0
        %572 = vmatprep.subr.mxu0 0.0
        %573 = vmatpush1.msra.mxu0 0.0
        %574 = vmatprep.subr.mxu0 0.0
        %575 = vmatpush1.msra.mxu0 0.0
        %576 = vmatprep.subr.mxu0 0.0
        %577 = vmatpush1.msra.mxu0 0.0
        %578 = vmatprep.subr.mxu0 0.0
        %579 = vmatpush1.msra.mxu0 0.0
        %580 = vmatprep.subr.mxu0 0.0
        %581 = vmatpush1.msra.mxu0 0.0
        %582 = vmatprep.subr.mxu0 0.0
        %583 = vmatpush1.msra.mxu0 0.0
        %584 = vmatprep.subr.mxu0 0.0
        %585 = vmatpush1.msra.mxu0 0.0
        %586 = vmatprep.subr.mxu0 0.0
        %587 = vmatpush1.msra.mxu0 0.0
        %588 = vmatprep.subr.mxu0 0.0
        %589 = vmatpush1.msra.mxu0 0.0
        %590 = vmatprep.subr.mxu0 0.0
        %591 = vmatpush1.msra.mxu0 0.0
        %592 = vmatprep.subr.mxu0 0.0
        %593 = vmatpush1.msra.mxu0 0.0
        %594 = vmatprep.subr.mxu0 0.0
        %595 = vmatpush1.msra.mxu0 0.0
        %596 = vmatprep.subr.mxu0 0.0
        %597 = vmatpush1.msra.mxu0 0.0
        %598 = vmatprep.mubr.f32.mxu0 0.0
        %599 = vmatmul.mubr.f32.gmra.mrb[0].mxu0 %v528
        %v600 = vpop.f32.mrb[0].mxu0
        %v601 = vadd.f32 0.0, %v600
        %v602 = vpop.f32.mrb[0].mxu0
        %603 = vdwg.mxu0
        %v605 = vsel %vm526, %v429, 0
        %607 = vmatprep.subr.mxu0 0.0
        %608 = vmatpush1.msra.mxu0 %v532
        %609 = vmatprep.subr.mxu0 0.0
        %610 = vmatpush1.msra.mxu0 0.0
        %611 = vmatprep.subr.mxu0 0.0
        %612 = vmatpush1.msra.mxu0 0.0
        %613 = vmatprep.subr.mxu0 0.0
        %614 = vmatpush1.msra.mxu0 0.0
        %615 = vmatprep.subr.mxu0 0.0
        %616 = vmatpush1.msra.mxu0 0.0
        %617 = vmatprep.subr.mxu0 0.0
        %618 = vmatpush1.msra.mxu0 0.0
        %619 = vmatprep.subr.mxu0 0.0
        %620 = vmatpush1.msra.mxu0 0.0
        %621 = vmatprep.subr.mxu0 0.0
        %622 = vmatpush1.msra.mxu0 0.0
        %623 = vmatprep.subr.mxu0 0.0
        %624 = vmatpush1.msra.mxu0 0.0
        %625 = vmatprep.subr.mxu0 0.0
        %626 = vmatpush1.msra.mxu0 0.0
        %627 = vmatprep.subr.mxu0 0.0
        %628 = vmatpush1.msra.mxu0 0.0
        %629 = vmatprep.subr.mxu0 0.0
        %630 = vmatpush1.msra.mxu0 0.0
        %631 = vmatprep.subr.mxu0 0.0
        %632 = vmatpush1.msra.mxu0 0.0
        %633 = vmatprep.subr.mxu0 0.0
        %634 = vmatpush1.msra.mxu0 0.0
        %635 = vmatprep.subr.mxu0 0.0
        %636 = vmatpush1.msra.mxu0 0.0
        %637 = vmatprep.subr.mxu0 0.0
        %638 = vmatpush1.msra.mxu0 0.0
        %639 = vmatprep.subr.mxu0 0.0
        %640 = vmatpush1.msra.mxu0 0.0
        %641 = vmatprep.subr.mxu0 0.0
        %642 = vmatpush1.msra.mxu0 0.0
        %643 = vmatprep.subr.mxu0 0.0
        %644 = vmatpush1.msra.mxu0 0.0
        %645 = vmatprep.subr.mxu0 0.0
        %646 = vmatpush1.msra.mxu0 0.0
        %647 = vmatprep.subr.mxu0 0.0
        %648 = vmatpush1.msra.mxu0 0.0
        %649 = vmatprep.subr.mxu0 0.0
        %650 = vmatpush1.msra.mxu0 0.0
        %651 = vmatprep.subr.mxu0 0.0
        %652 = vmatpush1.msra.mxu0 0.0
        %653 = vmatprep.subr.mxu0 0.0
        %654 = vmatpush1.msra.mxu0 0.0
        %655 = vmatprep.subr.mxu0 0.0
        %656 = vmatpush1.msra.mxu0 0.0
        %657 = vmatprep.subr.mxu0 0.0
        %658 = vmatpush1.msra.mxu0 0.0
        %659 = vmatprep.subr.mxu0 0.0
        %660 = vmatpush1.msra.mxu0 0.0
        %661 = vmatprep.subr.mxu0 0.0
        %662 = vmatpush1.msra.mxu0 0.0
        %663 = vmatprep.subr.mxu0 0.0
        %664 = vmatpush1.msra.mxu0 0.0
        %665 = vmatprep.subr.mxu0 0.0
        %666 = vmatpush1.msra.mxu0 0.0
        %667 = vmatprep.subr.mxu0 0.0
        %668 = vmatpush1.msra.mxu0 0.0
        %669 = vmatprep.subr.mxu0 0.0
        %670 = vmatpush1.msra.mxu0 0.0
        %671 = vmatprep.mubr.f32.mxu0 0.0
        %672 = vmatmul.mubr.f32.gmra.mrb[0].mxu0 %v605
        %v673 = vpop.f32.mrb[0].mxu0
        %v674 = vadd.f32 %v601, %v673
        %v675 = vpop.f32.mrb[0].mxu0
        %676 = vdwg.mxu0
        %v677 = vxor.u32 %v674, 2147483648
        %v678 = vmul.f32 %v677, 1.442695
        %v679 = vpow.pop %v678
        %v680 = vadd.f32 %v679, 1.0
        %v681 = vrcp.pop %v680
        %v682 = vmul.f32 1.0, %v681
        %v683 = vlaneseq
        %v684 = vshrl.u32 %v683, 7
        %v685 = vsub.s32 0, %v684
        %v686 = vrot.slane %v682, %v685
        %688 = vbcast.lane.b32.xlu0 %v686, 256
        %v689 = vpop.permute.xlu0 %688
        %s691 = sor.u32 256, 8
        %692 = vbcast.lane.b32.xlu0 %v686, %s691
        %v693 = vpop.permute.xlu0 %692
        %s695 = sor.u32 256, 16
        %696 = vbcast.lane.b32.xlu0 %v686, %s695
        %v697 = vpop.permute.xlu0 %696
        %s699 = sor.u32 256, 24
        %700 = vbcast.lane.b32.xlu0 %v686, %s699
        %v701 = vpop.permute.xlu0 %700
        %v702 = vmul.f32 %v284, %v689
        %v703 = vmul.f32 %v285, %v689
        %v704 = vmul.f32 %v286, %v693
        %v705 = vmul.f32 %v287, %v693
        %v706 = vmul.f32 %v288, %v697
        %v707 = vmul.f32 %v289, %v697
        %v708 = vmul.f32 %v290, %v701
        %v709 = vmul.f32 %v291, %v701
        %710 = vst [vmem:[#allocation2] sm:$0xff] %v702
        %711 = vst [vmem:[#allocation2 + $0x8] sm:$0xff] %v703
        %712 = vst [vmem:[#allocation2 + $0x10] sm:$0xff] %v704
        %713 = vst [vmem:[#allocation2 + $0x18] sm:$0xff] %v705
        %714 = vst [vmem:[#allocation2 + $0x20] sm:$0xff] %v706
        %715 = vst [vmem:[#allocation2 + $0x28] sm:$0xff] %v707
        %716 = vst [vmem:[#allocation2 + $0x30] sm:$0xff] %v708
        %717 = vst [vmem:[#allocation2 + $0x38] sm:$0xff] %v709
        %v718 = vld [vmem:[#allocation2] sm:$0xff]
        %v719 = vld [vmem:[#allocation2 + $0x8] sm:$0xff]
        %v720 = vld [vmem:[#allocation2 + $0x10] sm:$0xff]
        %v721 = vld [vmem:[#allocation2 + $0x18] sm:$0xff]
        %v722 = vld [vmem:[#allocation2 + $0x20] sm:$0xff]
        %v723 = vld [vmem:[#allocation2 + $0x28] sm:$0xff]
        %v724 = vld [vmem:[#allocation2 + $0x30] sm:$0xff]
        %v725 = vld [vmem:[#allocation2 + $0x38] sm:$0xff]
        %v726 = vadd.f32 %v718, %v720
        %v727 = vadd.f32 %v726, %v722
        %v728 = vadd.f32 %v727, %v724
        %v729 = vrot.slane %v728, 4
        %v730 = vadd.f32 %v728, %v729
        %v731 = vrot.slane %v730, 2
        %v732 = vadd.f32 %v730, %v731
        %v733 = vrot.slane %v732, 1
        %v734 = vadd.f32 %v732, %v733
        %v735 = vadd.f32 %v719, %v721
        %v736 = vadd.f32 %v735, %v723
        %v737 = vadd.f32 %v736, %v725
        %v738 = vrot.slane %v737, 4
        %v739 = vadd.f32 %v737, %v738
        %v740 = vrot.slane %v739, 2
        %v741 = vadd.f32 %v739, %v740
        %v742 = vrot.slane %v741, 1
        %v743 = vadd.f32 %v741, %v742
        %v744 = vmul.f32 %v734, 0.03125
        %v745 = vmul.f32 %v743, 0.03125
        %v746 = vmax.f32 %v718, %v722
        %v747 = vmax.f32 %v720, %v724
        %v748 = vmax.f32 %v746, %v747
        %v749 = vrot.slane %v748, 4
        %v750 = vmax.f32 %v748, %v749
        %v751 = vrot.slane %v750, 2
        %v752 = vmax.f32 %v750, %v751
        %v753 = vrot.slane %v752, 1
        %v754 = vmax.f32 %v752, %v753
        %v755 = vmax.f32 %v719, %v723
        %v756 = vmax.f32 %v721, %v725
        %v757 = vmax.f32 %v755, %v756
        %v758 = vrot.slane %v757, 4
        %v759 = vmax.f32 %v757, %v758
        %v760 = vrot.slane %v759, 2
        %v761 = vmax.f32 %v759, %v760
        %v762 = vrot.slane %v761, 1
        %v763 = vmax.f32 %v761, %v762
        %v764 = vld [vmem:[%s3] sm:$0x3]
        %v765 = vld [vmem:[%s4] sm:$0x3]
        %vm766 = vcmp.ge.s32.totalorder %v764, 1
        %vm767 = vcmp.lt.s32.totalorder %v764, 17
        %vm768 = vmand %vm766, %vm767
        %v769 = vsel %vm768, 1, 0
        %v770 = vcvt.s32.f32 %v769
        %vm771 = vcmp.ge.s32.totalorder %v764, 0
        %vm772 = vcmp.lt.s32.totalorder %v764, 16
        %vm773 = vmand %vm771, %vm772
        %v774 = vsel %vm773, 1, 0
        %v775 = vcvt.s32.f32 %v774
        %vm776 = vcmp.ge.s32.totalorder %v764, 4294967295
        %vm777 = vcmp.lt.s32.totalorder %v764, 15
        %vm778 = vmand %vm776, %vm777
        %v779 = vsel %vm778, 1, 0
        %v780 = vcvt.s32.f32 %v779
        %vm781 = vcmp.ge.s32.totalorder %v765, 1
        %vm782 = vcmp.lt.s32.totalorder %v765, 17
        %vm783 = vmand %vm781, %vm782
        %v784 = vsel %vm783, 1, 0
        %v785 = vcvt.s32.f32 %v784
        %vm786 = vcmp.ge.s32.totalorder %v765, 0
        %vm787 = vcmp.lt.s32.totalorder %v765, 16
        %vm788 = vmand %vm786, %vm787
        %v789 = vsel %vm788, 1, 0
        %v790 = vcvt.s32.f32 %v789
        %vm791 = vcmp.ge.s32.totalorder %v765, 4294967295
        %vm792 = vcmp.lt.s32.totalorder %v765, 15
        %vm793 = vmand %vm791, %vm792
        %v794 = vsel %vm793, 1, 0
        %v795 = vcvt.s32.f32 %v794
        %798 = vrot.lane.b32.xlu0 %v745, 17
        %v799 = vpop.permute.xlu0 %798
        %800 = vrot.lane.b32.xlu0 %v763, 17
        %v801 = vpop.permute.xlu0 %800
        %806 = vrot.lane.b32.xlu0 %v744, 17
        %v807 = vpop.permute.xlu0 %806
        %808 = vrot.lane.b32.xlu0 %v754, 17
        %v809 = vpop.permute.xlu0 %808
        %vm810 = vcmask 138240
        %v811 = vsel %vm810, %v807, %v799
        %v812 = vsel %vm810, %v809, %v801
        %v815 = vsel %vm810, %v799, %v807
        %v816 = vsel %vm810, %v801, %v809
        %v817 = vmul.f32 %v770, %v785
        %s818 = sld [smem:[#allocation3]]
        %v819 = vstv %s818
        %v820 = vmul.f32 %v817, %v819
        %s821 = sld [smem:[#allocation3 + $0x9]]
        %v822 = vstv %s821
        %v823 = vmul.f32 %v817, %v822
        %v825 = vcombine.low %v815, %v811
        %v827 = vunpack.c.l.s4 1966171168
        %v828 = vunpack.c.0.s8 %v827
        %v829 = vlaneseq
        %v830 = vshrl.u32 %v829, 7
        %v831 = vsub.s32 %v828, %v830
        %v832 = vrot.slane %v825, %v831
        %v834 = vunpack.c.l.s4 1966171168
        %v835 = vunpack.c.0.s8 %v834
        %v836 = vlaneseq
        %v837 = vshrl.u32 %v836, 7
        %v838 = vsub.s32 %v835, %v837
        %v839 = vrot.slane %v832, %v838
        %v841 = vmul.f32 %v820, %v839
        %v842 = vadd.f32 %v841, 0.0
        %v844 = vcombine.low %v816, %v812
        %v846 = vunpack.c.l.s4 1966171168
        %v847 = vunpack.c.0.s8 %v846
        %v848 = vlaneseq
        %v849 = vshrl.u32 %v848, 7
        %v850 = vsub.s32 %v847, %v849
        %v851 = vrot.slane %v844, %v850
        %v853 = vunpack.c.l.s4 1966171168
        %v854 = vunpack.c.0.s8 %v853
        %v855 = vlaneseq
        %v856 = vshrl.u32 %v855, 7
        %v857 = vsub.s32 %v854, %v856
        %v858 = vrot.slane %v851, %v857
        %v860 = vmul.f32 %v823, %v858
        %v861 = vadd.f32 %v842, %v860
        %862 = vrot.lane.b32.xlu0 %v745, 16
        %v863 = vpop.permute.xlu0 %862
        %864 = vrot.lane.b32.xlu0 %v763, 16
        %v865 = vpop.permute.xlu0 %864
        %868 = vrot.lane.b32.xlu0 %v744, 16
        %v869 = vpop.permute.xlu0 %868
        %870 = vrot.lane.b32.xlu0 %v754, 16
        %v871 = vpop.permute.xlu0 %870
        %vm872 = vcmask 130048
        %v873 = vsel %vm872, %v869, %v863
        %v874 = vsel %vm872, %v871, %v865
        %v877 = vsel %vm872, %v863, %v869
        %v878 = vsel %vm872, %v865, %v871
        %v879 = vmul.f32 %v770, %v790
        %s880 = sld [smem:[#allocation3 + $0x1]]
        %v881 = vstv %s880
        %v882 = vmul.f32 %v879, %v881
        %s883 = sld [smem:[#allocation3 + $0xa]]
        %v884 = vstv %s883
        %v885 = vmul.f32 %v879, %v884
        %v887 = vcombine.low %v877, %v873
        %v889 = vunpack.c.l.s4 1966171168
        %v890 = vunpack.c.0.s8 %v889
        %v891 = vlaneseq
        %v892 = vshrl.u32 %v891, 7
        %v893 = vsub.s32 %v890, %v892
        %v894 = vrot.slane %v887, %v893
        %v896 = vunpack.c.l.s4 1966171168
        %v897 = vunpack.c.0.s8 %v896
        %v898 = vlaneseq
        %v899 = vshrl.u32 %v898, 7
        %v900 = vsub.s32 %v897, %v899
        %v901 = vrot.slane %v894, %v900
        %v903 = vmul.f32 %v882, %v901
        %v904 = vadd.f32 %v861, %v903
        %v906 = vcombine.low %v878, %v874
        %v908 = vunpack.c.l.s4 1966171168
        %v909 = vunpack.c.0.s8 %v908
        %v910 = vlaneseq
        %v911 = vshrl.u32 %v910, 7
        %v912 = vsub.s32 %v909, %v911
        %v913 = vrot.slane %v906, %v912
        %v915 = vunpack.c.l.s4 1966171168
        %v916 = vunpack.c.0.s8 %v915
        %v917 = vlaneseq
        %v918 = vshrl.u32 %v917, 7
        %v919 = vsub.s32 %v916, %v918
        %v920 = vrot.slane %v913, %v919
        %v922 = vmul.f32 %v885, %v920
        %v923 = vadd.f32 %v904, %v922
        %924 = vrot.lane.b32.xlu0 %v745, 15
        %v925 = vpop.permute.xlu0 %924
        %926 = vrot.lane.b32.xlu0 %v763, 15
        %v927 = vpop.permute.xlu0 %926
        %930 = vrot.lane.b32.xlu0 %v744, 15
        %v931 = vpop.permute.xlu0 %930
        %932 = vrot.lane.b32.xlu0 %v754, 15
        %v933 = vpop.permute.xlu0 %932
        %vm934 = vcmask 121856
        %v935 = vsel %vm934, %v931, %v925
        %v936 = vsel %vm934, %v933, %v927
        %v939 = vsel %vm934, %v925, %v931
        %v940 = vsel %vm934, %v927, %v933
        %v941 = vmul.f32 %v770, %v795
        %s942 = sld [smem:[#allocation3 + $0x2]]
        %v943 = vstv %s942
        %v944 = vmul.f32 %v941, %v943
        %s945 = sld [smem:[#allocation3 + $0xb]]
        %v946 = vstv %s945
        %v947 = vmul.f32 %v941, %v946
        %v949 = vcombine.low %v939, %v935
        %v951 = vunpack.c.l.s4 1966171168
        %v952 = vunpack.c.0.s8 %v951
        %v953 = vlaneseq
        %v954 = vshrl.u32 %v953, 7
        %v955 = vsub.s32 %v952, %v954
        %v956 = vrot.slane %v949, %v955
        %v958 = vunpack.c.l.s4 1966171168
        %v959 = vunpack.c.0.s8 %v958
        %v960 = vlaneseq
        %v961 = vshrl.u32 %v960, 7
        %v962 = vsub.s32 %v959, %v961
        %v963 = vrot.slane %v956, %v962
        %v965 = vmul.f32 %v944, %v963
        %v966 = vadd.f32 %v923, %v965
        %v968 = vcombine.low %v940, %v936
        %v970 = vunpack.c.l.s4 1966171168
        %v971 = vunpack.c.0.s8 %v970
        %v972 = vlaneseq
        %v973 = vshrl.u32 %v972, 7
        %v974 = vsub.s32 %v971, %v973
        %v975 = vrot.slane %v968, %v974
        %v977 = vunpack.c.l.s4 1966171168
        %v978 = vunpack.c.0.s8 %v977
        %v979 = vlaneseq
        %v980 = vshrl.u32 %v979, 7
        %v981 = vsub.s32 %v978, %v980
        %v982 = vrot.slane %v975, %v981
        %v984 = vmul.f32 %v947, %v982
        %v985 = vadd.f32 %v966, %v984
        %986 = vrot.lane.b32.xlu0 %v745, 1
        %v987 = vpop.permute.xlu0 %986
        %988 = vrot.lane.b32.xlu0 %v763, 1
        %v989 = vpop.permute.xlu0 %988
        %992 = vrot.lane.b32.xlu0 %v744, 1
        %v993 = vpop.permute.xlu0 %992
        %994 = vrot.lane.b32.xlu0 %v754, 1
        %v995 = vpop.permute.xlu0 %994
        %vm996 = vcmask 7168
        %v997 = vsel %vm996, %v993, %v987
        %v998 = vsel %vm996, %v995, %v989
        %v1001 = vsel %vm996, %v987, %v993
        %v1002 = vsel %vm996, %v989, %v995
        %v1003 = vmul.f32 %v775, %v785
        %s1004 = sld [smem:[#allocation3 + $0x3]]
        %v1005 = vstv %s1004
        %v1006 = vmul.f32 %v1003, %v1005
        %s1007 = sld [smem:[#allocation3 + $0xc]]
        %v1008 = vstv %s1007
        %v1009 = vmul.f32 %v1003, %v1008
        %v1011 = vcombine.low %v1001, %v997
        %v1013 = vunpack.c.l.s4 1966171168
        %v1014 = vunpack.c.0.s8 %v1013
        %v1015 = vlaneseq
        %v1016 = vshrl.u32 %v1015, 7
        %v1017 = vsub.s32 %v1014, %v1016
        %v1018 = vrot.slane %v1011, %v1017
        %v1020 = vunpack.c.l.s4 1966171168
        %v1021 = vunpack.c.0.s8 %v1020
        %v1022 = vlaneseq
        %v1023 = vshrl.u32 %v1022, 7
        %v1024 = vsub.s32 %v1021, %v1023
        %v1025 = vrot.slane %v1018, %v1024
        %v1027 = vmul.f32 %v1006, %v1025
        %v1028 = vadd.f32 %v985, %v1027
        %v1030 = vcombine.low %v1002, %v998
        %v1032 = vunpack.c.l.s4 1966171168
        %v1033 = vunpack.c.0.s8 %v1032
        %v1034 = vlaneseq
        %v1035 = vshrl.u32 %v1034, 7
        %v1036 = vsub.s32 %v1033, %v1035
        %v1037 = vrot.slane %v1030, %v1036
        %v1039 = vunpack.c.l.s4 1966171168
        %v1040 = vunpack.c.0.s8 %v1039
        %v1041 = vlaneseq
        %v1042 = vshrl.u32 %v1041, 7
        %v1043 = vsub.s32 %v1040, %v1042
        %v1044 = vrot.slane %v1037, %v1043
        %v1046 = vmul.f32 %v1009, %v1044
        %v1047 = vadd.f32 %v1028, %v1046
        %v1048 = vmul.f32 %v775, %v790
        %s1049 = sld [smem:[#allocation3 + $0x4]]
        %v1050 = vstv %s1049
        %v1051 = vmul.f32 %v1048, %v1050
        %s1052 = sld [smem:[#allocation3 + $0xd]]
        %v1053 = vstv %s1052
        %v1054 = vmul.f32 %v1048, %v1053
        %v1055 = vcombine.low %v744, %v745
        %v1057 = vunpack.c.l.s4 1966171168
        %v1058 = vunpack.c.0.s8 %v1057
        %v1059 = vlaneseq
        %v1060 = vshrl.u32 %v1059, 7
        %v1061 = vsub.s32 %v1058, %v1060
        %v1062 = vrot.slane %v1055, %v1061
        %v1064 = vunpack.c.l.s4 1966171168
        %v1065 = vunpack.c.0.s8 %v1064
        %v1066 = vlaneseq
        %v1067 = vshrl.u32 %v1066, 7
        %v1068 = vsub.s32 %v1065, %v1067
        %v1069 = vrot.slane %v1062, %v1068
        %v1071 = vmul.f32 %v1051, %v1069
        %v1072 = vadd.f32 %v1047, %v1071
        %v1073 = vcombine.low %v754, %v763
        %v1075 = vunpack.c.l.s4 1966171168
        %v1076 = vunpack.c.0.s8 %v1075
        %v1077 = vlaneseq
        %v1078 = vshrl.u32 %v1077, 7
        %v1079 = vsub.s32 %v1076, %v1078
        %v1080 = vrot.slane %v1073, %v1079
        %v1082 = vunpack.c.l.s4 1966171168
        %v1083 = vunpack.c.0.s8 %v1082
        %v1084 = vlaneseq
        %v1085 = vshrl.u32 %v1084, 7
        %v1086 = vsub.s32 %v1083, %v1085
        %v1087 = vrot.slane %v1080, %v1086
        %v1089 = vmul.f32 %v1054, %v1087
        %v1090 = vadd.f32 %v1072, %v1089
        %1091 = vrot.lane.b32.xlu0 %v744, 127
        %v1092 = vpop.permute.xlu0 %1091
        %1093 = vrot.lane.b32.xlu0 %v745, 127
        %v1094 = vpop.permute.xlu0 %1093
        %1095 = vrot.lane.b32.xlu0 %v754, 127
        %v1096 = vpop.permute.xlu0 %1095
        %1097 = vrot.lane.b32.xlu0 %v763, 127
        %v1098 = vpop.permute.xlu0 %1097
        %vm1099 = vcmask 1039360
        %v1100 = vsel %vm1099, %v1092, %v1094
        %v1101 = vsel %vm1099, %v1096, %v1098
        %v1106 = vsel %vm1099, %v1094, %v1092
        %v1107 = vsel %vm1099, %v1098, %v1096
        %v1108 = vmul.f32 %v775, %v795
        %s1109 = sld [smem:[#allocation3 + $0x5]]
        %v1110 = vstv %s1109
        %v1111 = vmul.f32 %v1108, %v1110
        %s1112 = sld [smem:[#allocation3 + $0xe]]
        %v1113 = vstv %s1112
        %v1114 = vmul.f32 %v1108, %v1113
        %v1116 = vcombine.low %v1100, %v1106
        %v1118 = vunpack.c.l.s4 1966171168
        %v1119 = vunpack.c.0.s8 %v1118
        %v1120 = vlaneseq
        %v1121 = vshrl.u32 %v1120, 7
        %v1122 = vsub.s32 %v1119, %v1121
        %v1123 = vrot.slane %v1116, %v1122
        %v1125 = vunpack.c.l.s4 1966171168
        %v1126 = vunpack.c.0.s8 %v1125
        %v1127 = vlaneseq
        %v1128 = vshrl.u32 %v1127, 7
        %v1129 = vsub.s32 %v1126, %v1128
        %v1130 = vrot.slane %v1123, %v1129
        %v1132 = vmul.f32 %v1111, %v1130
        %v1133 = vadd.f32 %v1090, %v1132
        %v1135 = vcombine.low %v1101, %v1107
        %v1137 = vunpack.c.l.s4 1966171168
        %v1138 = vunpack.c.0.s8 %v1137
        %v1139 = vlaneseq
        %v1140 = vshrl.u32 %v1139, 7
        %v1141 = vsub.s32 %v1138, %v1140
        %v1142 = vrot.slane %v1135, %v1141
        %v1144 = vunpack.c.l.s4 1966171168
        %v1145 = vunpack.c.0.s8 %v1144
        %v1146 = vlaneseq
        %v1147 = vshrl.u32 %v1146, 7
        %v1148 = vsub.s32 %v1145, %v1147
        %v1149 = vrot.slane %v1142, %v1148
        %v1151 = vmul.f32 %v1114, %v1149
        %v1152 = vadd.f32 %v1133, %v1151
        %1153 = vrot.lane.b32.xlu0 %v744, 113
        %v1154 = vpop.permute.xlu0 %1153
        %1155 = vrot.lane.b32.xlu0 %v745, 113
        %v1156 = vpop.permute.xlu0 %1155
        %1157 = vrot.lane.b32.xlu0 %v754, 113
        %v1158 = vpop.permute.xlu0 %1157
        %1159 = vrot.lane.b32.xlu0 %v763, 113
        %v1160 = vpop.permute.xlu0 %1159
        %vm1161 = vcmask 924672
        %v1162 = vsel %vm1161, %v1154, %v1156
        %v1163 = vsel %vm1161, %v1158, %v1160
        %v1168 = vsel %vm1161, %v1156, %v1154
        %v1169 = vsel %vm1161, %v1160, %v1158
        %v1170 = vmul.f32 %v780, %v785
        %s1171 = sld [smem:[#allocation3 + $0x6]]
        %v1172 = vstv %s1171
        %v1173 = vmul.f32 %v1170, %v1172
        %s1174 = sld [smem:[#allocation3 + $0xf]]
        %v1175 = vstv %s1174
        %v1176 = vmul.f32 %v1170, %v1175
        %v1178 = vcombine.low %v1162, %v1168
        %v1180 = vunpack.c.l.s4 1966171168
        %v1181 = vunpack.c.0.s8 %v1180
        %v1182 = vlaneseq
        %v1183 = vshrl.u32 %v1182, 7
        %v1184 = vsub.s32 %v1181, %v1183
        %v1185 = vrot.slane %v1178, %v1184
        %v1187 = vunpack.c.l.s4 1966171168
        %v1188 = vunpack.c.0.s8 %v1187
        %v1189 = vlaneseq
        %v1190 = vshrl.u32 %v1189, 7
        %v1191 = vsub.s32 %v1188, %v1190
        %v1192 = vrot.slane %v1185, %v1191
        %v1194 = vmul.f32 %v1173, %v1192
        %v1195 = vadd.f32 %v1152, %v1194
        %v1197 = vcombine.low %v1163, %v1169
        %v1199 = vunpack.c.l.s4 1966171168
        %v1200 = vunpack.c.0.s8 %v1199
        %v1201 = vlaneseq
        %v1202 = vshrl.u32 %v1201, 7
        %v1203 = vsub.s32 %v1200, %v1202
        %v1204 = vrot.slane %v1197, %v1203
        %v1206 = vunpack.c.l.s4 1966171168
        %v1207 = vunpack.c.0.s8 %v1206
        %v1208 = vlaneseq
        %v1209 = vshrl.u32 %v1208, 7
        %v1210 = vsub.s32 %v1207, %v1209
        %v1211 = vrot.slane %v1204, %v1210
        %v1213 = vmul.f32 %v1176, %v1211
        %v1214 = vadd.f32 %v1195, %v1213
        %1215 = vrot.lane.b32.xlu0 %v744, 112
        %v1216 = vpop.permute.xlu0 %1215
        %1217 = vrot.lane.b32.xlu0 %v745, 112
        %v1218 = vpop.permute.xlu0 %1217
        %1219 = vrot.lane.b32.xlu0 %v754, 112
        %v1220 = vpop.permute.xlu0 %1219
        %1221 = vrot.lane.b32.xlu0 %v763, 112
        %v1222 = vpop.permute.xlu0 %1221
        %vm1223 = vcmask 916480
        %v1224 = vsel %vm1223, %v1216, %v1218
        %v1225 = vsel %vm1223, %v1220, %v1222
        %v1230 = vsel %vm1223, %v1218, %v1216
        %v1231 = vsel %vm1223, %v1222, %v1220
        %v1232 = vmul.f32 %v780, %v790
        %s1233 = sld [smem:[#allocation3 + $0x7]]
        %v1234 = vstv %s1233
        %v1235 = vmul.f32 %v1232, %v1234
        %s1236 = sld [smem:[#allocation3 + $0x10]]
        %v1237 = vstv %s1236
        %v1238 = vmul.f32 %v1232, %v1237
        %v1240 = vcombine.low %v1224, %v1230
        %v1242 = vunpack.c.l.s4 1966171168
        %v1243 = vunpack.c.0.s8 %v1242
        %v1244 = vlaneseq
        %v1245 = vshrl.u32 %v1244, 7
        %v1246 = vsub.s32 %v1243, %v1245
        %v1247 = vrot.slane %v1240, %v1246
        %v1249 = vunpack.c.l.s4 1966171168
        %v1250 = vunpack.c.0.s8 %v1249
        %v1251 = vlaneseq
        %v1252 = vshrl.u32 %v1251, 7
        %v1253 = vsub.s32 %v1250, %v1252
        %v1254 = vrot.slane %v1247, %v1253
        %v1256 = vmul.f32 %v1235, %v1254
        %v1257 = vadd.f32 %v1214, %v1256
        %v1259 = vcombine.low %v1225, %v1231
        %v1261 = vunpack.c.l.s4 1966171168
        %v1262 = vunpack.c.0.s8 %v1261
        %v1263 = vlaneseq
        %v1264 = vshrl.u32 %v1263, 7
        %v1265 = vsub.s32 %v1262, %v1264
        %v1266 = vrot.slane %v1259, %v1265
        %v1268 = vunpack.c.l.s4 1966171168
        %v1269 = vunpack.c.0.s8 %v1268
        %v1270 = vlaneseq
        %v1271 = vshrl.u32 %v1270, 7
        %v1272 = vsub.s32 %v1269, %v1271
        %v1273 = vrot.slane %v1266, %v1272
        %v1275 = vmul.f32 %v1238, %v1273
        %v1276 = vadd.f32 %v1257, %v1275
        %1277 = vrot.lane.b32.xlu0 %v744, 111
        %v1278 = vpop.permute.xlu0 %1277
        %1279 = vrot.lane.b32.xlu0 %v745, 111
        %v1280 = vpop.permute.xlu0 %1279
        %1281 = vrot.lane.b32.xlu0 %v754, 111
        %v1282 = vpop.permute.xlu0 %1281
        %1283 = vrot.lane.b32.xlu0 %v763, 111
        %v1284 = vpop.permute.xlu0 %1283
        %vm1285 = vcmask 908288
        %v1286 = vsel %vm1285, %v1278, %v1280
        %v1287 = vsel %vm1285, %v1282, %v1284
        %v1292 = vsel %vm1285, %v1280, %v1278
        %v1293 = vsel %vm1285, %v1284, %v1282
        %v1294 = vmul.f32 %v780, %v795
        %s1295 = sld [smem:[#allocation3 + $0x8]]
        %v1296 = vstv %s1295
        %v1297 = vmul.f32 %v1294, %v1296
        %s1298 = sld [smem:[#allocation3 + $0x11]]
        %v1299 = vstv %s1298
        %v1300 = vmul.f32 %v1294, %v1299
        %v1302 = vcombine.low %v1286, %v1292
        %v1304 = vunpack.c.l.s4 1966171168
        %v1305 = vunpack.c.0.s8 %v1304
        %v1306 = vlaneseq
        %v1307 = vshrl.u32 %v1306, 7
        %v1308 = vsub.s32 %v1305, %v1307
        %v1309 = vrot.slane %v1302, %v1308
        %v1311 = vunpack.c.l.s4 1966171168
        %v1312 = vunpack.c.0.s8 %v1311
        %v1313 = vlaneseq
        %v1314 = vshrl.u32 %v1313, 7
        %v1315 = vsub.s32 %v1312, %v1314
        %v1316 = vrot.slane %v1309, %v1315
        %v1318 = vmul.f32 %v1297, %v1316
        %v1319 = vadd.f32 %v1276, %v1318
        %v1321 = vcombine.low %v1287, %v1293
        %v1323 = vunpack.c.l.s4 1966171168
        %v1324 = vunpack.c.0.s8 %v1323
        %v1325 = vlaneseq
        %v1326 = vshrl.u32 %v1325, 7
        %v1327 = vsub.s32 %v1324, %v1326
        %v1328 = vrot.slane %v1321, %v1327
        %v1330 = vunpack.c.l.s4 1966171168
        %v1331 = vunpack.c.0.s8 %v1330
        %v1332 = vlaneseq
        %v1333 = vshrl.u32 %v1332, 7
        %v1334 = vsub.s32 %v1331, %v1333
        %v1335 = vrot.slane %v1328, %v1334
        %v1337 = vmul.f32 %v1300, %v1335
        %v1338 = vadd.f32 %v1319, %v1337
        %v1339 = vxor.u32 %v1338, 2147483648
        %v1340 = vmul.f32 %v1339, 1.442695
        %v1341 = vpow.pop %v1340
        %v1342 = vadd.f32 %v1341, 1.0
        %v1343 = vrcp.pop %v1342
        %v1344 = vmul.f32 1.0, %v1343
        %v1346 = vlaneseq
        %v1347 = vshrl.u32 %v1346, 7
        %v1348 = vsub.s32 0, %v1347
        %v1349 = vrot.slane %v1344, %v1348
        %v1350 = vlaneseq
        %v1351 = vshrl.u32 %v1350, 7
        %v1352 = vsub.s32 1, %v1351
        %v1353 = vrot.slane %v1344, %v1352
        %v1356 = vmul.f32 %v718, %v1349
        %v1357 = vmul.f32 %v719, %v1353
        %v1358 = vmul.f32 %v720, %v1349
        %v1359 = vmul.f32 %v721, %v1353
        %v1360 = vmul.f32 %v722, %v1349
        %v1361 = vmul.f32 %v723, %v1353
        %v1362 = vmul.f32 %v724, %v1349
        %v1363 = vmul.f32 %v725, %v1353
        %1364 = vst [vmem:[%s283] sm:$0xff] %v1356
        %1365 = vst [vmem:[%s283 + $0x8] sm:$0xff] %v1357
        %1366 = vst [vmem:[%s283 + $0x10] sm:$0xff] %v1358
        %1367 = vst [vmem:[%s283 + $0x18] sm:$0xff] %v1359
        %1368 = vst [vmem:[%s283 + $0x20] sm:$0xff] %v1360
        %1369 = vst [vmem:[%s283 + $0x28] sm:$0xff] %v1361
        %1370 = vst [vmem:[%s283 + $0x30] sm:$0xff] %v1362
        %1371 = vst [vmem:[%s283 + $0x38] sm:$0xff] %v1363
        %s1372 = sand.u32 %s163, 1
        %s1373 = scalar_lea.sflag [#allocation5], %s1372
        %s1374 = sand.u32 %s163, 1
        %s1375 = smul.addr %s1374, 64
        %s1376 = scalar_lea.vmem [#allocation8], %s1375
        // Predicated region
        $region53: #{tpu_custom_call.1} parent=43 // pred_check
          %p1377 = pneg %p173
        $region54: #{tpu_custom_call.1} parent=43 // pred_check_branch
          %1379 = sbr.rel (%p1377) target = $region56
        $region55: #{tpu_custom_call.1} parent=43 // pred_region
          %s1381 = ssub.s32 1024, 1024
          %1382 = vsyncadd %s1373, %s1381
          %s1383 = smul.addr %s24, 8
          %s1384 = smul.addr %s1383, 128
          %s1385 = scalar_lea.hbm %s6, %s1384
          %s1386 = sshll.u32 %s1376, 4
          %s1387 = int_to_ptr.vmem [resolvable:$true] %s1386
          %1392 = dma.vmem_to_hbm [thread:$0]  %s1387, 1024, %s1385, %s1373, 256, 256, 16
        $region56: #{tpu_custom_call.1} parent=43 // pred_fallthru
          _
      $region44: #{tpu_custom_call.1} parent=5 // pred_fallthru
        _
      %p1393 = scmp.le.s32.totalorder 2, %s19
      // Predicated region
      $region57: #{tpu_custom_call.1} parent=5 // pred_check
        %p1394 = pneg %p1393
      $region58: #{tpu_custom_call.1} parent=5 // pred_check_branch
        %1396 = sbr.rel (%p1394) target = $region60
      $region59: #{tpu_custom_call.1} parent=5 // pred_region
        %s1397 = ssub.s32 %s19, 2
        // Predicated region
        $region61: #{tpu_custom_call.1} parent=59 // pred_check
          %p1398 = pneg %p179
        $region62: #{tpu_custom_call.1} parent=59 // pred_check_branch
          %1400 = sbr.rel (%p1398) target = $region64
        $region63: #{tpu_custom_call.1} parent=59 // pred_region
          %s1401 = sand.u32 %s164, 1
          %s1402 = scalar_lea.sflag [#allocation5], %s1401
          %s1403 = sand.u32 %s164, 1
          %s1404 = smul.addr %s1403, 64
          %s1405 = scalar_lea.vmem [#allocation8], %s1404
          %1406 = dma.done %s1402, 1024
        $region64: #{tpu_custom_call.1} parent=59 // pred_fallthru
          _
      $region60: #{tpu_custom_call.1} parent=5 // pred_fallthru
        _
    $region6: #{tpu_custom_call.1} parent=1 // loop_footer
      %s23 = sadd.s32 1, %s19
    $region7: #{tpu_custom_call.1} parent=1 // loop_footer_branch
      %18 = sbr.rel target = $region3
    $region8: #{tpu_custom_call.1} parent=1 // loop_exit
      _
    %1407 = vsyncpa [#allocation4], 1
    %s1408 = scalar_lea.sflag [#allocation4], 1
    %1409 = vsyncpa %s1408, 1
    %1410 = vsyncpa [#allocation5], 1
    %s1411 = scalar_lea.sflag [#allocation5], 1
    %1412 = vsyncpa %s1411, 1
    %1413 = vsyncpa [#allocation6], 1
    %s1414 = scalar_lea.sflag [#allocation6], 1
    %1415 = vsyncpa %s1414, 1

</llo_original>
